<compile_context>
chip_gen: v7x
topology: tpu7x:2x2x1
jax: 0.10.0
libtpu: 0.0.40
codegen_flags: <defaults>
</compile_context>

<pallas_src>
import numpy as np
import jax
import jax.numpy as jnp
from jax.experimental import pallas as pl
from jax.experimental.pallas import tpu as pltpu

F_X = 3    # node feature width   (mlp2 in = 3 + 32 = 35)
F_E = 2    # edge feature width   (mlp1 in = 3 + 2  = 5)
H1A = 16   # mlp1 hidden
H1B = 32   # mlp1 output (message width)
H2A = 16   # mlp2 hidden
H2B = 1    # mlp2 output


def _round_up(v, m):
    return (v + m - 1) // m * m


def _vpu_matmul(a, w):
    """[M, K] @ [K, H] with tiny K (2/3) as unrolled VPU FMAs.

    Avoids padding a K=2/3 contraction onto the MXU (systolic fill + result-FIFO
    latency for almost no useful work); the FMAs land in otherwise idle VALU slots.
    """
    acc = a[:, 0:1] * w[0:1, :]
    for k in range(1, w.shape[0]):
        acc = acc + a[:, k:k + 1] * w[k:k + 1, :]
    return acc


def make_igcnet50(n_pad, d_pad):
    """Build the fused 3-layer IGCNet50 forward for a fixed (padded) graph shape."""

    def kernel(x_ref, g_ref, ea_ref, valid_ref,
               w1ax_ref, w1ae_ref, b1a_ref, w1b_ref, b1b_ref,
               w2ax_ref, w2aa_ref, b2a_ref, w2b_ref, b2b_ref,
               out_ref):
        f32 = jnp.float32
        x = x_ref[...]            # [n_pad, 3]      node features (nodes on sublanes)
        g = g_ref[...]            # [e_pad, n_pad]  one-hot source gather (0-rows = pad slots)
        ea = ea_ref[...]          # [e_pad, 2]      slot-ordered edge attrs (0 for pad slots)
        valid = valid_ref[...]    # [e_pad, 1]      1.0 real edge slot, 0.0 padding
        w1ax = w1ax_ref[...]; w1ae = w1ae_ref[...]; b1a = b1a_ref[...]
        w1b = w1b_ref[...];  b1b = b1b_ref[...]
        w2ax = w2ax_ref[...]; w2aa = w2aa_ref[...]; b2a = b2a_ref[...]
        w2b = w2b_ref[...];  b2b = b2b_ref[...]

        # edge_attr projection is identical across the 3 layers -> hoist it.
        ea_proj = _vpu_matmul(ea, w1ae)                                 # [e_pad, 16]
        col = jax.lax.broadcasted_iota(jnp.int32, (n_pad, F_X), 1)

        # Three IGConv applications with shared weights, x kept VMEM-resident.
        for _ in range(3):
            # ---- message: mlp1(cat([x_j, edge_attr])) ----------------------
            # concat folded into a split matmul; the per-edge source gather is
            # folded into the one-hot matmul  g @ (x @ W1a_x).
            xw = _vpu_matmul(x, w1ax)                                   # [n_pad, 16]
            h1 = jnp.dot(g, xw, preferred_element_type=f32) + ea_proj + b1a
            h1 = jnp.maximum(h1, 0.0)                                   # [e_pad, 16]
            msg = jnp.dot(h1, w1b, preferred_element_type=f32) + b1b
            msg = jnp.maximum(msg, 0.0) * valid                         # [e_pad, 32]

            # ---- aggregate: per-node max over incoming-edge slots ----------
            # slot-major layout: rows [d*n_pad : (d+1)*n_pad] hold slot d of
            # every node -> aligned static sublane slices; no transpose, no
            # [N, 32, E] broadcast, no cross-lane reduce, no dense mask.
            # msg >= 0 and padded slots are exactly 0 => PyG max (empty -> 0).
            aggr = msg[0:n_pad, :]
            for d in range(1, d_pad):
                aggr = jnp.maximum(aggr, msg[d * n_pad:(d + 1) * n_pad, :])

            # ---- update: cat([x[:, :-1], sigmoid(mlp2(cat([x, aggr])))]) ---
            h2 = (_vpu_matmul(x, w2ax)
                  + jnp.dot(aggr, w2aa, preferred_element_type=f32) + b2a)
            h2 = jnp.maximum(h2, 0.0)                                   # [n_pad, 16]
            comb = jax.nn.sigmoid(
                jnp.dot(h2, w2b, preferred_element_type=f32) + b2b)     # [n_pad, 1]
            # overwrite only the last column (no lane concat / relayout)
            x = jnp.where(col < F_X - 1, x, jnp.broadcast_to(comb, (n_pad, F_X)))

        out_ref[...] = x

    @jax.jit
    def forward(x_pad, g, ea_slots, valid, params):
        args = (x_pad, g, ea_slots, valid,
                params["w1a_x"], params["w1a_e"], params["b1a"],
                params["w1b"], params["b1b"],
                params["w2a_x"], params["w2a_a"], params["b2a"],
                params["w2b"], params["b2b"])
        vmem = lambda: pl.BlockSpec(memory_space=pltpu.MemorySpace.VMEM)
        return pl.pallas_call(
            kernel,
            out_shape=jax.ShapeDtypeStruct((n_pad, F_X), jnp.float32),
            in_specs=[vmem() for _ in args],
            out_specs=vmem(),
        )(*args)

    return forward


# ----------------------- static (host-side) graph preprocessing ---------------
def build_graph_tables(edge_index, edge_attr, num_nodes):
    """Slot-major padded edge tables for the fused kernel.

    Row r = slot * n_pad + target_node holds one incoming edge of that node
    (or a zero padding slot).  Returns:
      g        [e_pad, n_pad] one-hot source-gather matrix (zero rows = padding)
      ea_slots [e_pad, F_E]   edge attrs per slot (zeros for padding)
      valid    [e_pad, 1]     1.0 for real edges, 0.0 for padding
    """
    src = np.asarray(edge_index[0], dtype=np.int64)
    tgt = np.asarray(edge_index[1], dtype=np.int64)
    ea = np.asarray(edge_attr, dtype=np.float32)
    n = int(num_nodes)
    e = int(src.shape[0])

    n_pad = max(_round_up(n, 8), 8)
    deg = np.bincount(tgt, minlength=n) if e > 0 else np.zeros(n, np.int64)
    d_max = int(deg.max()) if deg.size else 0
    d_pad = max(_round_up(max(d_max, 1), 8), 8)
    e_pad = n_pad * d_pad

    g = np.zeros((e_pad, n_pad), np.float32)
    ea_slots = np.zeros((e_pad, F_E), np.float32)
    valid = np.zeros((e_pad, 1), np.float32)
    fill = np.zeros(n, np.int64)
    for idx in range(e):
        t = int(tgt[idx])
        s = int(fill[t]); fill[t] += 1
        row = s * n_pad + t                       # slot-major row index
        g[row, int(src[idx])] = 1.0
        ea_slots[row] = ea[idx]
        valid[row, 0] = 1.0
    return g, ea_slots, valid, n_pad, d_pad


# ----------------------------- parameter setup --------------------------------
def _init_linear(key, fan_in, fan_out):
    kw, kb = jax.random.split(key)
    bound = float(fan_in) ** -0.5
    w = jax.random.uniform(kw, (fan_in, fan_out), jnp.float32, -bound, bound)
    b = jax.random.uniform(kb, (1, fan_out), jnp.float32, -bound, bound)
    return w, b


def make_params(key):
    k1, k2, k3, k4 = jax.random.split(key, 4)
    w1a, b1a = _init_linear(k1, F_X + F_E, H1A)   # Lin(5, 16)
    w1b, b1b = _init_linear(k2, H1A, H1B)         # Lin(16, 32)
    w2a, b2a = _init_linear(k3, F_X + H1B, H2A)   # Lin(35, 16)
    w2b, b2b = _init_linear(k4, H2A, H2B)         # Lin(16, 1)
    return dict(
        w1a_x=w1a[:F_X], w1a_e=w1a[F_X:], b1a=b1a,
        w1b=w1b, b1b=b1b,
        w2a_x=w2a[:F_X], w2a_a=w2a[F_X:], b2a=b2a,
        w2b=w2b, b2b=b2b,
    )


# ------------------------------ pure-JAX reference ----------------------------
def ref_forward(x, edge_index, edge_attr, params):
    src, tgt = edge_index[0], edge_index[1]
    n = x.shape[0]
    w1a = jnp.concatenate([params["w1a_x"], params["w1a_e"]], axis=0)
    w2a = jnp.concatenate([params["w2a_x"], params["w2a_a"]], axis=0)

    def conv(x):
        tmp = jnp.concatenate([x[src], edge_attr], axis=1)
        h = jax.nn.relu(tmp @ w1a + params["b1a"])
        msg = jax.nn.relu(h @ params["w1b"] + params["b1b"])
        aggr = jax.ops.segment_max(msg, tgt, num_segments=n)
        aggr = jnp.where(jnp.isfinite(aggr), aggr, 0.0)
        tmp2 = jnp.concatenate([x, aggr], axis=1)
        h2 = jax.nn.relu(tmp2 @ w2a + params["b2a"])
        comb = jax.nn.sigmoid(h2 @ params["w2b"] + params["b2b"])
        return jnp.concatenate([x[:, :-1], comb], axis=1)

    for _ in range(3):
        x = conv(x)
    return x


# ----------------------------------- main --------------------------------------
if __name__ == "__main__":
    key = jax.random.PRNGKey(0)
    k_params, kx, ke = jax.random.split(key, 3)

    N = 8  # nodes; fully-connected directed graph without self loops
    srcs, tgts = [], []
    for i in range(N):
        for j in range(N):
            if i != j:
                srcs.append(j)                # source j
                tgts.append(i)                # target i
    edge_index = np.array([srcs, tgts], dtype=np.int32)       # [2, E]
    E = edge_index.shape[1]

    x = jax.random.normal(kx, (N, F_X), jnp.float32)           # [8, 3]
    edge_attr = jax.random.normal(ke, (E, F_E), jnp.float32)   # [56, 2]
    params = make_params(k_params)

    # static graph preprocessing (edge_index is concrete): slot-major tables
    g, ea_slots, valid, n_pad, d_pad = build_graph_tables(
        edge_index, np.asarray(edge_attr), N)

    fwd = make_igcnet50(n_pad, d_pad)
    x_pad = jnp.zeros((n_pad, F_X), jnp.float32).at[:N].set(x)
    out_pad = jax.block_until_ready(
        fwd(x_pad, jnp.asarray(g), jnp.asarray(ea_slots), jnp.asarray(valid), params))
    out = out_pad[:N]

    ref = jax.block_until_ready(
        ref_forward(x, jnp.asarray(edge_index), edge_attr, params))
    assert out.shape == (N, F_X)
    assert jnp.allclose(out, ref, atol=5e-4), (out, ref)
    print("KERNEL_OK")
</pallas_src>

<mosaic_0001>
module attributes {stable_mosaic.version = 11 : i64} {
  func.func @kernel(%arg0: memref<8x3xf32, #tpu.memory_space<vmem>>, %arg1: memref<64x8xf32, #tpu.memory_space<vmem>>, %arg2: memref<64x2xf32, #tpu.memory_space<vmem>>, %arg3: memref<64x1xf32, #tpu.memory_space<vmem>>, %arg4: memref<3x16xf32, #tpu.memory_space<vmem>>, %arg5: memref<2x16xf32, #tpu.memory_space<vmem>>, %arg6: memref<1x16xf32, #tpu.memory_space<vmem>>, %arg7: memref<16x32xf32, #tpu.memory_space<vmem>>, %arg8: memref<1x32xf32, #tpu.memory_space<vmem>>, %arg9: memref<3x16xf32, #tpu.memory_space<vmem>>, %arg10: memref<32x16xf32, #tpu.memory_space<vmem>>, %arg11: memref<1x16xf32, #tpu.memory_space<vmem>>, %arg12: memref<16x1xf32, #tpu.memory_space<vmem>>, %arg13: memref<1x1xf32, #tpu.memory_space<vmem>>, %arg14: memref<8x3xf32, #tpu.memory_space<vmem>>) attributes {dimension_semantics = [], scalar_prefetch = 0 : i64, scratch_operands = 0 : i64, tpu.core_type = #tpu.core_type<tc>} {
    %c0 = arith.constant 0 : index
    %c0_0 = arith.constant 0 : index
    %0 = vector.load %arg0[%c0, %c0_0] : memref<8x3xf32, #tpu.memory_space<vmem>>, vector<8x3xf32>
    %c0_1 = arith.constant 0 : index
    %c0_2 = arith.constant 0 : index
    %1 = vector.load %arg1[%c0_1, %c0_2] : memref<64x8xf32, #tpu.memory_space<vmem>>, vector<64x8xf32>
    %c0_3 = arith.constant 0 : index
    %c0_4 = arith.constant 0 : index
    %2 = vector.load %arg2[%c0_3, %c0_4] : memref<64x2xf32, #tpu.memory_space<vmem>>, vector<64x2xf32>
    %c0_5 = arith.constant 0 : index
    %c0_6 = arith.constant 0 : index
    %3 = vector.load %arg3[%c0_5, %c0_6] : memref<64x1xf32, #tpu.memory_space<vmem>>, vector<64x1xf32>
    %c0_7 = arith.constant 0 : index
    %c0_8 = arith.constant 0 : index
    %4 = vector.load %arg4[%c0_7, %c0_8] : memref<3x16xf32, #tpu.memory_space<vmem>>, vector<3x16xf32>
    %c0_9 = arith.constant 0 : index
    %c0_10 = arith.constant 0 : index
    %5 = vector.load %arg5[%c0_9, %c0_10] : memref<2x16xf32, #tpu.memory_space<vmem>>, vector<2x16xf32>
    %c0_11 = arith.constant 0 : index
    %c0_12 = arith.constant 0 : index
    %6 = vector.load %arg6[%c0_11, %c0_12] : memref<1x16xf32, #tpu.memory_space<vmem>>, vector<1x16xf32>
    %c0_13 = arith.constant 0 : index
    %c0_14 = arith.constant 0 : index
    %7 = vector.load %arg7[%c0_13, %c0_14] : memref<16x32xf32, #tpu.memory_space<vmem>>, vector<16x32xf32>
    %c0_15 = arith.constant 0 : index
    %c0_16 = arith.constant 0 : index
    %8 = vector.load %arg8[%c0_15, %c0_16] : memref<1x32xf32, #tpu.memory_space<vmem>>, vector<1x32xf32>
    %c0_17 = arith.constant 0 : index
    %c0_18 = arith.constant 0 : index
    %9 = vector.load %arg9[%c0_17, %c0_18] : memref<3x16xf32, #tpu.memory_space<vmem>>, vector<3x16xf32>
    %c0_19 = arith.constant 0 : index
    %c0_20 = arith.constant 0 : index
    %10 = vector.load %arg10[%c0_19, %c0_20] : memref<32x16xf32, #tpu.memory_space<vmem>>, vector<32x16xf32>
    %c0_21 = arith.constant 0 : index
    %c0_22 = arith.constant 0 : index
    %11 = vector.load %arg11[%c0_21, %c0_22] : memref<1x16xf32, #tpu.memory_space<vmem>>, vector<1x16xf32>
    %c0_23 = arith.constant 0 : index
    %c0_24 = arith.constant 0 : index
    %12 = vector.load %arg12[%c0_23, %c0_24] : memref<16x1xf32, #tpu.memory_space<vmem>>, vector<16x1xf32>
    %c0_25 = arith.constant 0 : index
    %c0_26 = arith.constant 0 : index
    %13 = vector.load %arg13[%c0_25, %c0_26] : memref<1x1xf32, #tpu.memory_space<vmem>>, vector<1x1xf32>
    %14 = vector.extract_strided_slice %2 {offsets = [0, 0], sizes = [64, 1], strides = [1, 1]} : vector<64x2xf32> to vector<64x1xf32>
    %15 = vector.extract_strided_slice %5 {offsets = [0, 0], sizes = [1, 16], strides = [1, 1]} : vector<2x16xf32> to vector<1x16xf32>
    %16 = vector.broadcast %14 : vector<64x1xf32> to vector<64x16xf32>
    %17 = vector.broadcast %15 : vector<1x16xf32> to vector<64x16xf32>
    %18 = arith.mulf %16, %17 : vector<64x16xf32>
    %19 = vector.extract_strided_slice %2 {offsets = [0, 1], sizes = [64, 1], strides = [1, 1]} : vector<64x2xf32> to vector<64x1xf32>
    %20 = vector.extract_strided_slice %5 {offsets = [1, 0], sizes = [1, 16], strides = [1, 1]} : vector<2x16xf32> to vector<1x16xf32>
    %21 = vector.broadcast %19 : vector<64x1xf32> to vector<64x16xf32>
    %22 = vector.broadcast %20 : vector<1x16xf32> to vector<64x16xf32>
    %23 = arith.mulf %21, %22 : vector<64x16xf32>
    %24 = arith.addf %18, %23 : vector<64x16xf32>
    %25 = tpu.iota {dimensions = array<i32: 1>} : vector<8x3xi32>
    %26 = vector.extract_strided_slice %0 {offsets = [0, 0], sizes = [8, 1], strides = [1, 1]} : vector<8x3xf32> to vector<8x1xf32>
    %27 = vector.extract_strided_slice %4 {offsets = [0, 0], sizes = [1, 16], strides = [1, 1]} : vector<3x16xf32> to vector<1x16xf32>
    %28 = vector.broadcast %26 : vector<8x1xf32> to vector<8x16xf32>
    %29 = vector.broadcast %27 : vector<1x16xf32> to vector<8x16xf32>
    %30 = arith.mulf %28, %29 : vector<8x16xf32>
    %31 = vector.extract_strided_slice %0 {offsets = [0, 1], sizes = [8, 1], strides = [1, 1]} : vector<8x3xf32> to vector<8x1xf32>
    %32 = vector.extract_strided_slice %4 {offsets = [1, 0], sizes = [1, 16], strides = [1, 1]} : vector<3x16xf32> to vector<1x16xf32>
    %33 = vector.broadcast %31 : vector<8x1xf32> to vector<8x16xf32>
    %34 = vector.broadcast %32 : vector<1x16xf32> to vector<8x16xf32>
    %35 = arith.mulf %33, %34 : vector<8x16xf32>
    %36 = arith.addf %30, %35 : vector<8x16xf32>
    %37 = vector.extract_strided_slice %0 {offsets = [0, 2], sizes = [8, 1], strides = [1, 1]} : vector<8x3xf32> to vector<8x1xf32>
    %38 = vector.extract_strided_slice %4 {offsets = [2, 0], sizes = [1, 16], strides = [1, 1]} : vector<3x16xf32> to vector<1x16xf32>
    %39 = vector.broadcast %37 : vector<8x1xf32> to vector<8x16xf32>
    %40 = vector.broadcast %38 : vector<1x16xf32> to vector<8x16xf32>
    %41 = arith.mulf %39, %40 : vector<8x16xf32>
    %42 = arith.addf %36, %41 : vector<8x16xf32>
    %cst = arith.constant dense<0.000000e+00> : vector<64x16xf32>
    %43 = tpu.matmul %1, %42, %cst {dimension_numbers = #tpu.dot_dimension_numbers<[1], [0], [0], [1], [0, 0, 1, 1], [], []>} : vector<64x8xf32>, vector<8x16xf32>, vector<64x16xf32> -> vector<64x16xf32>
    %44 = arith.addf %43, %24 : vector<64x16xf32>
    %45 = vector.broadcast %6 : vector<1x16xf32> to vector<64x16xf32>
    %46 = arith.addf %44, %45 : vector<64x16xf32>
    %cst_27 = arith.constant 0.000000e+00 : f32
    %47 = vector.broadcast %cst_27 : f32 to vector<64x16xf32>
    %48 = arith.maximumf %46, %47 : vector<64x16xf32>
    %cst_28 = arith.constant dense<0.000000e+00> : vector<64x32xf32>
    %49 = tpu.matmul %48, %7, %cst_28 {dimension_numbers = #tpu.dot_dimension_numbers<[1], [0], [0], [1], [0, 0, 1, 1], [], []>} : vector<64x16xf32>, vector<16x32xf32>, vector<64x32xf32> -> vector<64x32xf32>
    %50 = vector.broadcast %8 : vector<1x32xf32> to vector<64x32xf32>
    %51 = arith.addf %49, %50 : vector<64x32xf32>
    %cst_29 = arith.constant 0.000000e+00 : f32
    %52 = vector.broadcast %cst_29 : f32 to vector<64x32xf32>
    %53 = arith.maximumf %51, %52 : vector<64x32xf32>
    %54 = vector.broadcast %3 : vector<64x1xf32> to vector<64x32xf32>
    %55 = arith.mulf %53, %54 : vector<64x32xf32>
    %56 = vector.extract_strided_slice %55 {offsets = [0, 0], sizes = [8, 32], strides = [1, 1]} : vector<64x32xf32> to vector<8x32xf32>
    %57 = vector.extract_strided_slice %55 {offsets = [8, 0], sizes = [8, 32], strides = [1, 1]} : vector<64x32xf32> to vector<8x32xf32>
    %58 = arith.maximumf %56, %57 : vector<8x32xf32>
    %59 = vector.extract_strided_slice %55 {offsets = [16, 0], sizes = [8, 32], strides = [1, 1]} : vector<64x32xf32> to vector<8x32xf32>
    %60 = arith.maximumf %58, %59 : vector<8x32xf32>
    %61 = vector.extract_strided_slice %55 {offsets = [24, 0], sizes = [8, 32], strides = [1, 1]} : vector<64x32xf32> to vector<8x32xf32>
    %62 = arith.maximumf %60, %61 : vector<8x32xf32>
    %63 = vector.extract_strided_slice %55 {offsets = [32, 0], sizes = [8, 32], strides = [1, 1]} : vector<64x32xf32> to vector<8x32xf32>
    %64 = arith.maximumf %62, %63 : vector<8x32xf32>
    %65 = vector.extract_strided_slice %55 {offsets = [40, 0], sizes = [8, 32], strides = [1, 1]} : vector<64x32xf32> to vector<8x32xf32>
    %66 = arith.maximumf %64, %65 : vector<8x32xf32>
    %67 = vector.extract_strided_slice %55 {offsets = [48, 0], sizes = [8, 32], strides = [1, 1]} : vector<64x32xf32> to vector<8x32xf32>
    %68 = arith.maximumf %66, %67 : vector<8x32xf32>
    %69 = vector.extract_strided_slice %55 {offsets = [56, 0], sizes = [8, 32], strides = [1, 1]} : vector<64x32xf32> to vector<8x32xf32>
    %70 = arith.maximumf %68, %69 : vector<8x32xf32>
    %71 = vector.extract_strided_slice %0 {offsets = [0, 0], sizes = [8, 1], strides = [1, 1]} : vector<8x3xf32> to vector<8x1xf32>
    %72 = vector.extract_strided_slice %9 {offsets = [0, 0], sizes = [1, 16], strides = [1, 1]} : vector<3x16xf32> to vector<1x16xf32>
    %73 = vector.broadcast %71 : vector<8x1xf32> to vector<8x16xf32>
    %74 = vector.broadcast %72 : vector<1x16xf32> to vector<8x16xf32>
    %75 = arith.mulf %73, %74 : vector<8x16xf32>
    %76 = vector.extract_strided_slice %0 {offsets = [0, 1], sizes = [8, 1], strides = [1, 1]} : vector<8x3xf32> to vector<8x1xf32>
    %77 = vector.extract_strided_slice %9 {offsets = [1, 0], sizes = [1, 16], strides = [1, 1]} : vector<3x16xf32> to vector<1x16xf32>
    %78 = vector.broadcast %76 : vector<8x1xf32> to vector<8x16xf32>
    %79 = vector.broadcast %77 : vector<1x16xf32> to vector<8x16xf32>
    %80 = arith.mulf %78, %79 : vector<8x16xf32>
    %81 = arith.addf %75, %80 : vector<8x16xf32>
    %82 = vector.extract_strided_slice %0 {offsets = [0, 2], sizes = [8, 1], strides = [1, 1]} : vector<8x3xf32> to vector<8x1xf32>
    %83 = vector.extract_strided_slice %9 {offsets = [2, 0], sizes = [1, 16], strides = [1, 1]} : vector<3x16xf32> to vector<1x16xf32>
    %84 = vector.broadcast %82 : vector<8x1xf32> to vector<8x16xf32>
    %85 = vector.broadcast %83 : vector<1x16xf32> to vector<8x16xf32>
    %86 = arith.mulf %84, %85 : vector<8x16xf32>
    %87 = arith.addf %81, %86 : vector<8x16xf32>
    %cst_30 = arith.constant dense<0.000000e+00> : vector<8x16xf32>
    %88 = tpu.matmul %70, %10, %cst_30 {dimension_numbers = #tpu.dot_dimension_numbers<[1], [0], [0], [1], [0, 0, 1, 1], [], []>} : vector<8x32xf32>, vector<32x16xf32>, vector<8x16xf32> -> vector<8x16xf32>
    %89 = arith.addf %87, %88 : vector<8x16xf32>
    %90 = vector.broadcast %11 : vector<1x16xf32> to vector<8x16xf32>
    %91 = arith.addf %89, %90 : vector<8x16xf32>
    %cst_31 = arith.constant 0.000000e+00 : f32
    %92 = vector.broadcast %cst_31 : f32 to vector<8x16xf32>
    %93 = arith.maximumf %91, %92 : vector<8x16xf32>
    %cst_32 = arith.constant dense<0.000000e+00> : vector<8x1xf32>
    %94 = tpu.matmul %93, %12, %cst_32 {dimension_numbers = #tpu.dot_dimension_numbers<[1], [0], [0], [1], [0, 0, 1, 1], [], []>} : vector<8x16xf32>, vector<16x1xf32>, vector<8x1xf32> -> vector<8x1xf32>
    %95 = vector.broadcast %13 : vector<1x1xf32> to vector<8x1xf32>
    %96 = arith.addf %94, %95 : vector<8x1xf32>
    %97 = arith.negf %96 : vector<8x1xf32>
    %98 = math.exp %97 : vector<8x1xf32>
    %cst_33 = arith.constant 1.000000e+00 : f32
    %99 = vector.broadcast %cst_33 : f32 to vector<8x1xf32>
    %100 = arith.addf %99, %98 : vector<8x1xf32>
    %101 = arith.divf %99, %100 : vector<8x1xf32>
    %c2_i32 = arith.constant 2 : i32
    %102 = vector.broadcast %c2_i32 : i32 to vector<8x3xi32>
    %103 = arith.cmpi slt, %25, %102 : vector<8x3xi32>
    %104 = vector.shape_cast %101 : vector<8x1xf32> to vector<8x1xf32>
    %105 = vector.broadcast %104 : vector<8x1xf32> to vector<8x3xf32>
    %106 = arith.select %103, %0, %105 : vector<8x3xi1>, vector<8x3xf32>
    %107 = vector.extract_strided_slice %106 {offsets = [0, 0], sizes = [8, 1], strides = [1, 1]} : vector<8x3xf32> to vector<8x1xf32>
    %108 = vector.extract_strided_slice %4 {offsets = [0, 0], sizes = [1, 16], strides = [1, 1]} : vector<3x16xf32> to vector<1x16xf32>
    %109 = vector.broadcast %107 : vector<8x1xf32> to vector<8x16xf32>
    %110 = vector.broadcast %108 : vector<1x16xf32> to vector<8x16xf32>
    %111 = arith.mulf %109, %110 : vector<8x16xf32>
    %112 = vector.extract_strided_slice %106 {offsets = [0, 1], sizes = [8, 1], strides = [1, 1]} : vector<8x3xf32> to vector<8x1xf32>
    %113 = vector.extract_strided_slice %4 {offsets = [1, 0], sizes = [1, 16], strides = [1, 1]} : vector<3x16xf32> to vector<1x16xf32>
    %114 = vector.broadcast %112 : vector<8x1xf32> to vector<8x16xf32>
    %115 = vector.broadcast %113 : vector<1x16xf32> to vector<8x16xf32>
    %116 = arith.mulf %114, %115 : vector<8x16xf32>
    %117 = arith.addf %111, %116 : vector<8x16xf32>
    %118 = vector.extract_strided_slice %106 {offsets = [0, 2], sizes = [8, 1], strides = [1, 1]} : vector<8x3xf32> to vector<8x1xf32>
    %119 = vector.extract_strided_slice %4 {offsets = [2, 0], sizes = [1, 16], strides = [1, 1]} : vector<3x16xf32> to vector<1x16xf32>
    %120 = vector.broadcast %118 : vector<8x1xf32> to vector<8x16xf32>
    %121 = vector.broadcast %119 : vector<1x16xf32> to vector<8x16xf32>
    %122 = arith.mulf %120, %121 : vector<8x16xf32>
    %123 = arith.addf %117, %122 : vector<8x16xf32>
    %cst_34 = arith.constant dense<0.000000e+00> : vector<64x16xf32>
    %124 = tpu.matmul %1, %123, %cst_34 {dimension_numbers = #tpu.dot_dimension_numbers<[1], [0], [0], [1], [0, 0, 1, 1], [], []>} : vector<64x8xf32>, vector<8x16xf32>, vector<64x16xf32> -> vector<64x16xf32>
    %125 = arith.addf %124, %24 : vector<64x16xf32>
    %126 = vector.broadcast %6 : vector<1x16xf32> to vector<64x16xf32>
    %127 = arith.addf %125, %126 : vector<64x16xf32>
    %cst_35 = arith.constant 0.000000e+00 : f32
    %128 = vector.broadcast %cst_35 : f32 to vector<64x16xf32>
    %129 = arith.maximumf %127, %128 : vector<64x16xf32>
    %cst_36 = arith.constant dense<0.000000e+00> : vector<64x32xf32>
    %130 = tpu.matmul %129, %7, %cst_36 {dimension_numbers = #tpu.dot_dimension_numbers<[1], [0], [0], [1], [0, 0, 1, 1], [], []>} : vector<64x16xf32>, vector<16x32xf32>, vector<64x32xf32> -> vector<64x32xf32>
    %131 = vector.broadcast %8 : vector<1x32xf32> to vector<64x32xf32>
    %132 = arith.addf %130, %131 : vector<64x32xf32>
    %cst_37 = arith.constant 0.000000e+00 : f32
    %133 = vector.broadcast %cst_37 : f32 to vector<64x32xf32>
    %134 = arith.maximumf %132, %133 : vector<64x32xf32>
    %135 = vector.broadcast %3 : vector<64x1xf32> to vector<64x32xf32>
    %136 = arith.mulf %134, %135 : vector<64x32xf32>
    %137 = vector.extract_strided_slice %136 {offsets = [0, 0], sizes = [8, 32], strides = [1, 1]} : vector<64x32xf32> to vector<8x32xf32>
    %138 = vector.extract_strided_slice %136 {offsets = [8, 0], sizes = [8, 32], strides = [1, 1]} : vector<64x32xf32> to vector<8x32xf32>
    %139 = arith.maximumf %137, %138 : vector<8x32xf32>
    %140 = vector.extract_strided_slice %136 {offsets = [16, 0], sizes = [8, 32], strides = [1, 1]} : vector<64x32xf32> to vector<8x32xf32>
    %141 = arith.maximumf %139, %140 : vector<8x32xf32>
    %142 = vector.extract_strided_slice %136 {offsets = [24, 0], sizes = [8, 32], strides = [1, 1]} : vector<64x32xf32> to vector<8x32xf32>
    %143 = arith.maximumf %141, %142 : vector<8x32xf32>
    %144 = vector.extract_strided_slice %136 {offsets = [32, 0], sizes = [8, 32], strides = [1, 1]} : vector<64x32xf32> to vector<8x32xf32>
    %145 = arith.maximumf %143, %144 : vector<8x32xf32>
    %146 = vector.extract_strided_slice %136 {offsets = [40, 0], sizes = [8, 32], strides = [1, 1]} : vector<64x32xf32> to vector<8x32xf32>
    %147 = arith.maximumf %145, %146 : vector<8x32xf32>
    %148 = vector.extract_strided_slice %136 {offsets = [48, 0], sizes = [8, 32], strides = [1, 1]} : vector<64x32xf32> to vector<8x32xf32>
    %149 = arith.maximumf %147, %148 : vector<8x32xf32>
    %150 = vector.extract_strided_slice %136 {offsets = [56, 0], sizes = [8, 32], strides = [1, 1]} : vector<64x32xf32> to vector<8x32xf32>
    %151 = arith.maximumf %149, %150 : vector<8x32xf32>
    %152 = vector.extract_strided_slice %106 {offsets = [0, 0], sizes = [8, 1], strides = [1, 1]} : vector<8x3xf32> to vector<8x1xf32>
    %153 = vector.extract_strided_slice %9 {offsets = [0, 0], sizes = [1, 16], strides = [1, 1]} : vector<3x16xf32> to vector<1x16xf32>
    %154 = vector.broadcast %152 : vector<8x1xf32> to vector<8x16xf32>
    %155 = vector.broadcast %153 : vector<1x16xf32> to vector<8x16xf32>
    %156 = arith.mulf %154, %155 : vector<8x16xf32>
    %157 = vector.extract_strided_slice %106 {offsets = [0, 1], sizes = [8, 1], strides = [1, 1]} : vector<8x3xf32> to vector<8x1xf32>
    %158 = vector.extract_strided_slice %9 {offsets = [1, 0], sizes = [1, 16], strides = [1, 1]} : vector<3x16xf32> to vector<1x16xf32>
    %159 = vector.broadcast %157 : vector<8x1xf32> to vector<8x16xf32>
    %160 = vector.broadcast %158 : vector<1x16xf32> to vector<8x16xf32>
    %161 = arith.mulf %159, %160 : vector<8x16xf32>
    %162 = arith.addf %156, %161 : vector<8x16xf32>
    %163 = vector.extract_strided_slice %106 {offsets = [0, 2], sizes = [8, 1], strides = [1, 1]} : vector<8x3xf32> to vector<8x1xf32>
    %164 = vector.extract_strided_slice %9 {offsets = [2, 0], sizes = [1, 16], strides = [1, 1]} : vector<3x16xf32> to vector<1x16xf32>
    %165 = vector.broadcast %163 : vector<8x1xf32> to vector<8x16xf32>
    %166 = vector.broadcast %164 : vector<1x16xf32> to vector<8x16xf32>
    %167 = arith.mulf %165, %166 : vector<8x16xf32>
    %168 = arith.addf %162, %167 : vector<8x16xf32>
    %cst_38 = arith.constant dense<0.000000e+00> : vector<8x16xf32>
    %169 = tpu.matmul %151, %10, %cst_38 {dimension_numbers = #tpu.dot_dimension_numbers<[1], [0], [0], [1], [0, 0, 1, 1], [], []>} : vector<8x32xf32>, vector<32x16xf32>, vector<8x16xf32> -> vector<8x16xf32>
    %170 = arith.addf %168, %169 : vector<8x16xf32>
    %171 = vector.broadcast %11 : vector<1x16xf32> to vector<8x16xf32>
    %172 = arith.addf %170, %171 : vector<8x16xf32>
    %cst_39 = arith.constant 0.000000e+00 : f32
    %173 = vector.broadcast %cst_39 : f32 to vector<8x16xf32>
    %174 = arith.maximumf %172, %173 : vector<8x16xf32>
    %cst_40 = arith.constant dense<0.000000e+00> : vector<8x1xf32>
    %175 = tpu.matmul %174, %12, %cst_40 {dimension_numbers = #tpu.dot_dimension_numbers<[1], [0], [0], [1], [0, 0, 1, 1], [], []>} : vector<8x16xf32>, vector<16x1xf32>, vector<8x1xf32> -> vector<8x1xf32>
    %176 = vector.broadcast %13 : vector<1x1xf32> to vector<8x1xf32>
    %177 = arith.addf %175, %176 : vector<8x1xf32>
    %178 = arith.negf %177 : vector<8x1xf32>
    %179 = math.exp %178 : vector<8x1xf32>
    %cst_41 = arith.constant 1.000000e+00 : f32
    %180 = vector.broadcast %cst_41 : f32 to vector<8x1xf32>
    %181 = arith.addf %180, %179 : vector<8x1xf32>
    %182 = arith.divf %180, %181 : vector<8x1xf32>
    %c2_i32_42 = arith.constant 2 : i32
    %183 = vector.broadcast %c2_i32_42 : i32 to vector<8x3xi32>
    %184 = arith.cmpi slt, %25, %183 : vector<8x3xi32>
    %185 = vector.shape_cast %182 : vector<8x1xf32> to vector<8x1xf32>
    %186 = vector.broadcast %185 : vector<8x1xf32> to vector<8x3xf32>
    %187 = arith.select %184, %106, %186 : vector<8x3xi1>, vector<8x3xf32>
    %188 = vector.extract_strided_slice %187 {offsets = [0, 0], sizes = [8, 1], strides = [1, 1]} : vector<8x3xf32> to vector<8x1xf32>
    %189 = vector.extract_strided_slice %4 {offsets = [0, 0], sizes = [1, 16], strides = [1, 1]} : vector<3x16xf32> to vector<1x16xf32>
    %190 = vector.broadcast %188 : vector<8x1xf32> to vector<8x16xf32>
    %191 = vector.broadcast %189 : vector<1x16xf32> to vector<8x16xf32>
    %192 = arith.mulf %190, %191 : vector<8x16xf32>
    %193 = vector.extract_strided_slice %187 {offsets = [0, 1], sizes = [8, 1], strides = [1, 1]} : vector<8x3xf32> to vector<8x1xf32>
    %194 = vector.extract_strided_slice %4 {offsets = [1, 0], sizes = [1, 16], strides = [1, 1]} : vector<3x16xf32> to vector<1x16xf32>
    %195 = vector.broadcast %193 : vector<8x1xf32> to vector<8x16xf32>
    %196 = vector.broadcast %194 : vector<1x16xf32> to vector<8x16xf32>
    %197 = arith.mulf %195, %196 : vector<8x16xf32>
    %198 = arith.addf %192, %197 : vector<8x16xf32>
    %199 = vector.extract_strided_slice %187 {offsets = [0, 2], sizes = [8, 1], strides = [1, 1]} : vector<8x3xf32> to vector<8x1xf32>
    %200 = vector.extract_strided_slice %4 {offsets = [2, 0], sizes = [1, 16], strides = [1, 1]} : vector<3x16xf32> to vector<1x16xf32>
    %201 = vector.broadcast %199 : vector<8x1xf32> to vector<8x16xf32>
    %202 = vector.broadcast %200 : vector<1x16xf32> to vector<8x16xf32>
    %203 = arith.mulf %201, %202 : vector<8x16xf32>
    %204 = arith.addf %198, %203 : vector<8x16xf32>
    %cst_43 = arith.constant dense<0.000000e+00> : vector<64x16xf32>
    %205 = tpu.matmul %1, %204, %cst_43 {dimension_numbers = #tpu.dot_dimension_numbers<[1], [0], [0], [1], [0, 0, 1, 1], [], []>} : vector<64x8xf32>, vector<8x16xf32>, vector<64x16xf32> -> vector<64x16xf32>
    %206 = arith.addf %205, %24 : vector<64x16xf32>
    %207 = vector.broadcast %6 : vector<1x16xf32> to vector<64x16xf32>
    %208 = arith.addf %206, %207 : vector<64x16xf32>
    %cst_44 = arith.constant 0.000000e+00 : f32
    %209 = vector.broadcast %cst_44 : f32 to vector<64x16xf32>
    %210 = arith.maximumf %208, %209 : vector<64x16xf32>
    %cst_45 = arith.constant dense<0.000000e+00> : vector<64x32xf32>
    %211 = tpu.matmul %210, %7, %cst_45 {dimension_numbers = #tpu.dot_dimension_numbers<[1], [0], [0], [1], [0, 0, 1, 1], [], []>} : vector<64x16xf32>, vector<16x32xf32>, vector<64x32xf32> -> vector<64x32xf32>
    %212 = vector.broadcast %8 : vector<1x32xf32> to vector<64x32xf32>
    %213 = arith.addf %211, %212 : vector<64x32xf32>
    %cst_46 = arith.constant 0.000000e+00 : f32
    %214 = vector.broadcast %cst_46 : f32 to vector<64x32xf32>
    %215 = arith.maximumf %213, %214 : vector<64x32xf32>
    %216 = vector.broadcast %3 : vector<64x1xf32> to vector<64x32xf32>
    %217 = arith.mulf %215, %216 : vector<64x32xf32>
    %218 = vector.extract_strided_slice %217 {offsets = [0, 0], sizes = [8, 32], strides = [1, 1]} : vector<64x32xf32> to vector<8x32xf32>
    %219 = vector.extract_strided_slice %217 {offsets = [8, 0], sizes = [8, 32], strides = [1, 1]} : vector<64x32xf32> to vector<8x32xf32>
    %220 = arith.maximumf %218, %219 : vector<8x32xf32>
    %221 = vector.extract_strided_slice %217 {offsets = [16, 0], sizes = [8, 32], strides = [1, 1]} : vector<64x32xf32> to vector<8x32xf32>
    %222 = arith.maximumf %220, %221 : vector<8x32xf32>
    %223 = vector.extract_strided_slice %217 {offsets = [24, 0], sizes = [8, 32], strides = [1, 1]} : vector<64x32xf32> to vector<8x32xf32>
    %224 = arith.maximumf %222, %223 : vector<8x32xf32>
    %225 = vector.extract_strided_slice %217 {offsets = [32, 0], sizes = [8, 32], strides = [1, 1]} : vector<64x32xf32> to vector<8x32xf32>
    %226 = arith.maximumf %224, %225 : vector<8x32xf32>
    %227 = vector.extract_strided_slice %217 {offsets = [40, 0], sizes = [8, 32], strides = [1, 1]} : vector<64x32xf32> to vector<8x32xf32>
    %228 = arith.maximumf %226, %227 : vector<8x32xf32>
    %229 = vector.extract_strided_slice %217 {offsets = [48, 0], sizes = [8, 32], strides = [1, 1]} : vector<64x32xf32> to vector<8x32xf32>
    %230 = arith.maximumf %228, %229 : vector<8x32xf32>
    %231 = vector.extract_strided_slice %217 {offsets = [56, 0], sizes = [8, 32], strides = [1, 1]} : vector<64x32xf32> to vector<8x32xf32>
    %232 = arith.maximumf %230, %231 : vector<8x32xf32>
    %233 = vector.extract_strided_slice %187 {offsets = [0, 0], sizes = [8, 1], strides = [1, 1]} : vector<8x3xf32> to vector<8x1xf32>
    %234 = vector.extract_strided_slice %9 {offsets = [0, 0], sizes = [1, 16], strides = [1, 1]} : vector<3x16xf32> to vector<1x16xf32>
    %235 = vector.broadcast %233 : vector<8x1xf32> to vector<8x16xf32>
    %236 = vector.broadcast %234 : vector<1x16xf32> to vector<8x16xf32>
    %237 = arith.mulf %235, %236 : vector<8x16xf32>
    %238 = vector.extract_strided_slice %187 {offsets = [0, 1], sizes = [8, 1], strides = [1, 1]} : vector<8x3xf32> to vector<8x1xf32>
    %239 = vector.extract_strided_slice %9 {offsets = [1, 0], sizes = [1, 16], strides = [1, 1]} : vector<3x16xf32> to vector<1x16xf32>
    %240 = vector.broadcast %238 : vector<8x1xf32> to vector<8x16xf32>
    %241 = vector.broadcast %239 : vector<1x16xf32> to vector<8x16xf32>
    %242 = arith.mulf %240, %241 : vector<8x16xf32>
    %243 = arith.addf %237, %242 : vector<8x16xf32>
    %244 = vector.extract_strided_slice %187 {offsets = [0, 2], sizes = [8, 1], strides = [1, 1]} : vector<8x3xf32> to vector<8x1xf32>
    %245 = vector.extract_strided_slice %9 {offsets = [2, 0], sizes = [1, 16], strides = [1, 1]} : vector<3x16xf32> to vector<1x16xf32>
    %246 = vector.broadcast %244 : vector<8x1xf32> to vector<8x16xf32>
    %247 = vector.broadcast %245 : vector<1x16xf32> to vector<8x16xf32>
    %248 = arith.mulf %246, %247 : vector<8x16xf32>
    %249 = arith.addf %243, %248 : vector<8x16xf32>
    %cst_47 = arith.constant dense<0.000000e+00> : vector<8x16xf32>
    %250 = tpu.matmul %232, %10, %cst_47 {dimension_numbers = #tpu.dot_dimension_numbers<[1], [0], [0], [1], [0, 0, 1, 1], [], []>} : vector<8x32xf32>, vector<32x16xf32>, vector<8x16xf32> -> vector<8x16xf32>
    %251 = arith.addf %249, %250 : vector<8x16xf32>
    %252 = vector.broadcast %11 : vector<1x16xf32> to vector<8x16xf32>
    %253 = arith.addf %251, %252 : vector<8x16xf32>
    %cst_48 = arith.constant 0.000000e+00 : f32
    %254 = vector.broadcast %cst_48 : f32 to vector<8x16xf32>
    %255 = arith.maximumf %253, %254 : vector<8x16xf32>
    %cst_49 = arith.constant dense<0.000000e+00> : vector<8x1xf32>
    %256 = tpu.matmul %255, %12, %cst_49 {dimension_numbers = #tpu.dot_dimension_numbers<[1], [0], [0], [1], [0, 0, 1, 1], [], []>} : vector<8x16xf32>, vector<16x1xf32>, vector<8x1xf32> -> vector<8x1xf32>
    %257 = vector.broadcast %13 : vector<1x1xf32> to vector<8x1xf32>
    %258 = arith.addf %256, %257 : vector<8x1xf32>
    %259 = arith.negf %258 : vector<8x1xf32>
    %260 = math.exp %259 : vector<8x1xf32>
    %cst_50 = arith.constant 1.000000e+00 : f32
    %261 = vector.broadcast %cst_50 : f32 to vector<8x1xf32>
    %262 = arith.addf %261, %260 : vector<8x1xf32>
    %263 = arith.divf %261, %262 : vector<8x1xf32>
    %c2_i32_51 = arith.constant 2 : i32
    %264 = vector.broadcast %c2_i32_51 : i32 to vector<8x3xi32>
    %265 = arith.cmpi slt, %25, %264 : vector<8x3xi32>
    %266 = vector.shape_cast %263 : vector<8x1xf32> to vector<8x1xf32>
    %267 = vector.broadcast %266 : vector<8x1xf32> to vector<8x3xf32>
    %268 = arith.select %265, %187, %267 : vector<8x3xi1>, vector<8x3xf32>
    %c0_52 = arith.constant 0 : index
    %c0_53 = arith.constant 0 : index
    %269 = vector.load %arg14[%c0_52, %c0_53] : memref<8x3xf32, #tpu.memory_space<vmem>>, vector<8x3xf32>
    tpu.vector_store %arg14[%c0_52, %c0_53], %268 {strides = array<i32>} : memref<8x3xf32, #tpu.memory_space<vmem>>, vector<8x3xf32>,
    return
  }
}

</mosaic_0001>

<llo_original>
// kernel: forward.1
$region0: #{forward.1}
  #allocation0 [shape = 'u32[]', space=smem, size = 0x4, offset = 0x4, fixed_abs, tag = 'smem constant byte address 0x4 - core index']
  #allocation1 [shape = 'u32[144,128]{1,0:T(1,128)}', space=vmem, size = 0x12000, scoped, tag = 'internal scratch']
  #allocation2 [shape = 'f32[1,1]{1,0:T(1,128)S(1)}', space=vmem, size = 0x200, scoped, tag = 'scoped memory for forward.1']
  %s0 = inlined_call_operand.vmem [shape: f32[8,3], index: 0, kind: input, shape index: {}]
  %s1 = inlined_call_operand.vmem [shape: f32[64,8], index: 1, kind: input, shape index: {}]
  %s2 = inlined_call_operand.vmem [shape: f32[64,2], index: 2, kind: input, shape index: {}]
  %s3 = inlined_call_operand.vmem [shape: f32[64,1], index: 3, kind: input, shape index: {}]
  %s4 = inlined_call_operand.vmem [shape: f32[3,16], index: 4, kind: input, shape index: {}]
  %s5 = inlined_call_operand.vmem [shape: f32[2,16], index: 5, kind: input, shape index: {}]
  %s6 = inlined_call_operand.vmem [shape: f32[1,16], index: 6, kind: input, shape index: {}]
  %s7 = inlined_call_operand.vmem [shape: f32[16,32], index: 7, kind: input, shape index: {}]
  %s8 = inlined_call_operand.vmem [shape: f32[1,32], index: 8, kind: input, shape index: {}]
  %s9 = inlined_call_operand.vmem [shape: f32[3,16], index: 9, kind: input, shape index: {}]
  %s10 = inlined_call_operand.vmem [shape: f32[32,16], index: 10, kind: input, shape index: {}]
  %s11 = inlined_call_operand.vmem [shape: f32[1,16], index: 11, kind: input, shape index: {}]
  %s12 = inlined_call_operand.vmem [shape: f32[16,1], index: 12, kind: input, shape index: {}]
  %s13 = inlined_call_operand.<no memory space> [shape: f32[1,1], index: 13, kind: input, shape index: {}]
  %s14 = inlined_call_operand.vmem [shape: f32[8,3], index: 14, kind: output, shape index: {}]
  %s15 = sld [smem:[#allocation0]]
  $region66: #{forward.1} parent=0
    _
  %s17 = ssub.s32 1, %s15
  %s18 = scalar_select 0, %s17, %s15
  %v19 = vstv %s13
  %20 = vst [vmem:[#allocation2] sm:$0x1] %v19
  // Predicated region
  $region2: #{forward.1} parent=0 // pred_check
    _
  $region3: #{forward.1} parent=0 // pred_check_branch
    %22 = sbr.rel (0) target = $region5
  $region4: #{forward.1} parent=0 // pred_region
    _
  $region5: #{forward.1} parent=0 // pred_fallthru
    _
  // Predicated region
  $region6: #{forward.1} parent=0 // pred_check
    _
  $region7: #{forward.1} parent=0 // pred_check_branch
    %24 = sbr.rel (0) target = $region9
  $region8: #{forward.1} parent=0 // pred_region
    _
  $region9: #{forward.1} parent=0 // pred_fallthru
    _
  // Predicated region
  $region10: #{forward.1} parent=0 // pred_check
    _
  $region11: #{forward.1} parent=0 // pred_check_branch
    %26 = sbr.rel (0) target = $region13
  $region12: #{forward.1} parent=0 // pred_region
    _
  $region13: #{forward.1} parent=0 // pred_fallthru
    _
  // Predicated region
  $region14: #{forward.1} parent=0 // pred_check
    _
  $region15: #{forward.1} parent=0 // pred_check_branch
    %28 = sbr.rel (0) target = $region17
  $region16: #{forward.1} parent=0 // pred_region
    _
  $region17: #{forward.1} parent=0 // pred_fallthru
    _
  // Predicated region
  $region18: #{forward.1} parent=0 // pred_check
    _
  $region19: #{forward.1} parent=0 // pred_check_branch
    %30 = sbr.rel (0) target = $region21
  $region20: #{forward.1} parent=0 // pred_region
    _
  $region21: #{forward.1} parent=0 // pred_fallthru
    _
  // Predicated region
  $region22: #{forward.1} parent=0 // pred_check
    _
  $region23: #{forward.1} parent=0 // pred_check_branch
    %32 = sbr.rel (0) target = $region25
  $region24: #{forward.1} parent=0 // pred_region
    _
  $region25: #{forward.1} parent=0 // pred_fallthru
    _
  // Predicated region
  $region26: #{forward.1} parent=0 // pred_check
    _
  $region27: #{forward.1} parent=0 // pred_check_branch
    %34 = sbr.rel (0) target = $region29
  $region28: #{forward.1} parent=0 // pred_region
    _
  $region29: #{forward.1} parent=0 // pred_fallthru
    _
  // Predicated region
  $region30: #{forward.1} parent=0 // pred_check
    _
  $region31: #{forward.1} parent=0 // pred_check_branch
    %36 = sbr.rel (0) target = $region33
  $region32: #{forward.1} parent=0 // pred_region
    _
  $region33: #{forward.1} parent=0 // pred_fallthru
    _
  // Predicated region
  $region34: #{forward.1} parent=0 // pred_check
    _
  $region35: #{forward.1} parent=0 // pred_check_branch
    %38 = sbr.rel (0) target = $region37
  $region36: #{forward.1} parent=0 // pred_region
    _
  $region37: #{forward.1} parent=0 // pred_fallthru
    _
  // Predicated region
  $region38: #{forward.1} parent=0 // pred_check
    _
  $region39: #{forward.1} parent=0 // pred_check_branch
    %40 = sbr.rel (0) target = $region41
  $region40: #{forward.1} parent=0 // pred_region
    _
  $region41: #{forward.1} parent=0 // pred_fallthru
    _
  // Predicated region
  $region42: #{forward.1} parent=0 // pred_check
    _
  $region43: #{forward.1} parent=0 // pred_check_branch
    %42 = sbr.rel (0) target = $region45
  $region44: #{forward.1} parent=0 // pred_region
    _
  $region45: #{forward.1} parent=0 // pred_fallthru
    _
  // Predicated region
  $region46: #{forward.1} parent=0 // pred_check
    _
  $region47: #{forward.1} parent=0 // pred_check_branch
    %44 = sbr.rel (0) target = $region49
  $region48: #{forward.1} parent=0 // pred_region
    _
  $region49: #{forward.1} parent=0 // pred_fallthru
    _
  // Predicated region
  $region50: #{forward.1} parent=0 // pred_check
    _
  $region51: #{forward.1} parent=0 // pred_check_branch
    %46 = sbr.rel (0) target = $region53
  $region52: #{forward.1} parent=0 // pred_region
    _
  $region53: #{forward.1} parent=0 // pred_fallthru
    _
  // Predicated region
  $region54: #{forward.1} parent=0 // pred_check
    _
  $region55: #{forward.1} parent=0 // pred_check_branch
    %48 = sbr.rel (0) target = $region57
  $region56: #{forward.1} parent=0 // pred_region
    _
  $region57: #{forward.1} parent=0 // pred_fallthru
    _
  %v49 = vld [vmem:[%s0] sm:$0xff]
  %v50 = vld [vmem:[%s1] sm:$0xff]
  %v51 = vld [vmem:[%s1 + $0x8] sm:$0xff]
  %v52 = vld [vmem:[%s1 + $0x10] sm:$0xff]
  %v53 = vld [vmem:[%s1 + $0x18] sm:$0xff]
  %v54 = vld [vmem:[%s1 + $0x20] sm:$0xff]
  %v55 = vld [vmem:[%s1 + $0x28] sm:$0xff]
  %v56 = vld [vmem:[%s1 + $0x30] sm:$0xff]
  %v57 = vld [vmem:[%s1 + $0x38] sm:$0xff]
  %v58 = vld [vmem:[%s2] sm:$0xff]
  %v59 = vld [vmem:[%s2 + $0x8] sm:$0xff]
  %v60 = vld [vmem:[%s2 + $0x10] sm:$0xff]
  %v61 = vld [vmem:[%s2 + $0x18] sm:$0xff]
  %v62 = vld [vmem:[%s2 + $0x20] sm:$0xff]
  %v63 = vld [vmem:[%s2 + $0x28] sm:$0xff]
  %v64 = vld [vmem:[%s2 + $0x30] sm:$0xff]
  %v65 = vld [vmem:[%s2 + $0x38] sm:$0xff]
  %v66 = vld [vmem:[%s3] sm:$0xff]
  %v67 = vld [vmem:[%s3 + $0x8] sm:$0xff]
  %v68 = vld [vmem:[%s3 + $0x10] sm:$0xff]
  %v69 = vld [vmem:[%s3 + $0x18] sm:$0xff]
  %v70 = vld [vmem:[%s3 + $0x20] sm:$0xff]
  %v71 = vld [vmem:[%s3 + $0x28] sm:$0xff]
  %v72 = vld [vmem:[%s3 + $0x30] sm:$0xff]
  %v73 = vld [vmem:[%s3 + $0x38] sm:$0xff]
  %v74 = vld [vmem:[%s4] sm:$0x7]
  %v75 = vld [vmem:[%s5] sm:$0x3]
  %v76 = vld [vmem:[%s6] sm:$0x1]
  %v77 = vld [vmem:[%s7] sm:$0xff]
  %v78 = vld [vmem:[%s7 + $0x8] sm:$0xff]
  %v79 = vld [vmem:[%s8] sm:$0x1]
  %v80 = vld [vmem:[%s9] sm:$0x7]
  %v81 = vld [vmem:[%s10] sm:$0xff]
  %v82 = vld [vmem:[%s10 + $0x8] sm:$0xff]
  %v83 = vld [vmem:[%s10 + $0x10] sm:$0xff]
  %v84 = vld [vmem:[%s10 + $0x18] sm:$0xff]
  %v85 = vld [vmem:[%s11] sm:$0x1]
  %v86 = vld [vmem:[%s12] sm:$0xff]
  %v87 = vld [vmem:[%s12 + $0x8] sm:$0xff]
  %v88 = vld [vmem:[#allocation2] sm:$0x1]
  %90 = vset.pattern.permute.xlu0 0
  %91 = vperm.xlu0 %90, %v58
  %v92 = vpop.permute.xlu0 %91
  %95 = vset.pattern.permute.xlu0 0
  %96 = vperm.xlu0 %95, %v59
  %v97 = vpop.permute.xlu0 %96
  %100 = vset.pattern.permute.xlu0 0
  %101 = vperm.xlu0 %100, %v60
  %v102 = vpop.permute.xlu0 %101
  %105 = vset.pattern.permute.xlu0 0
  %106 = vperm.xlu0 %105, %v61
  %v107 = vpop.permute.xlu0 %106
  %110 = vset.pattern.permute.xlu0 0
  %111 = vperm.xlu0 %110, %v62
  %v112 = vpop.permute.xlu0 %111
  %115 = vset.pattern.permute.xlu0 0
  %116 = vperm.xlu0 %115, %v63
  %v117 = vpop.permute.xlu0 %116
  %120 = vset.pattern.permute.xlu0 0
  %121 = vperm.xlu0 %120, %v64
  %v122 = vpop.permute.xlu0 %121
  %125 = vset.pattern.permute.xlu0 0
  %126 = vperm.xlu0 %125, %v65
  %v127 = vpop.permute.xlu0 %126
  %v129 = vlaneseq
  %v130 = vshrl.u32 %v129, 7
  %v131 = vsub.s32 0, %v130
  %v132 = vrot.slane %v75, %v131
  %v133 = vmul.f32 %v92, %v132
  %v134 = vmul.f32 %v97, %v132
  %v135 = vmul.f32 %v102, %v132
  %v136 = vmul.f32 %v107, %v132
  %v137 = vmul.f32 %v112, %v132
  %v138 = vmul.f32 %v117, %v132
  %v139 = vmul.f32 %v122, %v132
  %v140 = vmul.f32 %v127, %v132
  %141 = vset.pattern.permute.xlu0 1
  %142 = vperm.xlu0 %141, %v58
  %v143 = vpop.permute.xlu0 %142
  %145 = vset.pattern.permute.xlu0 1
  %146 = vperm.xlu0 %145, %v59
  %v147 = vpop.permute.xlu0 %146
  %149 = vset.pattern.permute.xlu0 1
  %150 = vperm.xlu0 %149, %v60
  %v151 = vpop.permute.xlu0 %150
  %153 = vset.pattern.permute.xlu0 1
  %154 = vperm.xlu0 %153, %v61
  %v155 = vpop.permute.xlu0 %154
  %157 = vset.pattern.permute.xlu0 1
  %158 = vperm.xlu0 %157, %v62
  %v159 = vpop.permute.xlu0 %158
  %161 = vset.pattern.permute.xlu0 1
  %162 = vperm.xlu0 %161, %v63
  %v163 = vpop.permute.xlu0 %162
  %165 = vset.pattern.permute.xlu0 1
  %166 = vperm.xlu0 %165, %v64
  %v167 = vpop.permute.xlu0 %166
  %169 = vset.pattern.permute.xlu0 1
  %170 = vperm.xlu0 %169, %v65
  %v171 = vpop.permute.xlu0 %170
  %v173 = vlaneseq
  %v174 = vshrl.u32 %v173, 7
  %v175 = vsub.s32 1, %v174
  %v176 = vrot.slane %v75, %v175
  %v177 = vmul.f32 %v143, %v176
  %v178 = vmul.f32 %v147, %v176
  %v179 = vmul.f32 %v151, %v176
  %v180 = vmul.f32 %v155, %v176
  %v181 = vmul.f32 %v159, %v176
  %v182 = vmul.f32 %v163, %v176
  %v183 = vmul.f32 %v167, %v176
  %v184 = vmul.f32 %v171, %v176
  %v185 = vadd.f32 %v133, %v177
  %v186 = vadd.f32 %v134, %v178
  %v187 = vadd.f32 %v135, %v179
  %v188 = vadd.f32 %v136, %v180
  %v189 = vadd.f32 %v137, %v181
  %v190 = vadd.f32 %v138, %v182
  %v191 = vadd.f32 %v139, %v183
  %v192 = vadd.f32 %v140, %v184
  %v193 = vlaneseq
  %v194 = vand.u32 %v193, 127
  %196 = vset.pattern.permute.xlu0 0
  %197 = vperm.xlu0 %196, %v49
  %v198 = vpop.permute.xlu0 %197
  %v200 = vlaneseq
  %v201 = vshrl.u32 %v200, 7
  %v202 = vsub.s32 0, %v201
  %v203 = vrot.slane %v74, %v202
  %v204 = vmul.f32 %v198, %v203
  %205 = vset.pattern.permute.xlu0 1
  %206 = vperm.xlu0 %205, %v49
  %v207 = vpop.permute.xlu0 %206
  %v209 = vlaneseq
  %v210 = vshrl.u32 %v209, 7
  %v211 = vsub.s32 1, %v210
  %v212 = vrot.slane %v74, %v211
  %v213 = vmul.f32 %v207, %v212
  %v214 = vadd.f32 %v204, %v213
  %215 = vset.pattern.permute.xlu0 2
  %216 = vperm.xlu0 %215, %v49
  %v217 = vpop.permute.xlu0 %216
  %v219 = vlaneseq
  %v220 = vshrl.u32 %v219, 7
  %v221 = vsub.s32 2, %v220
  %v222 = vrot.slane %v74, %v221
  %v223 = vmul.f32 %v217, %v222
  %v224 = vadd.f32 %v214, %v223
  %vm225 = vcmask 64512
  %v227 = vsel %vm225, %v50, 0
  %v230 = vsel %vm225, %v51, 0
  %v233 = vsel %vm225, %v52, 0
  %v236 = vsel %vm225, %v53, 0
  %v239 = vsel %vm225, %v54, 0
  %v242 = vsel %vm225, %v55, 0
  %v245 = vsel %vm225, %v56, 0
  %v248 = vsel %vm225, %v57, 0
  %250 = vmatprep.subr.mxu0 0.0
  %251 = vmatpush1.msra.mxu0 %v224
  %252 = vmatprep.subr.mxu0 0.0
  %253 = vmatpush1.msra.mxu0 0.0
  %254 = vmatprep.subr.mxu0 0.0
  %255 = vmatpush1.msra.mxu0 0.0
  %256 = vmatprep.subr.mxu0 0.0
  %257 = vmatpush1.msra.mxu0 0.0
  %258 = vmatprep.subr.mxu0 0.0
  %259 = vmatpush1.msra.mxu0 0.0
  %260 = vmatprep.subr.mxu0 0.0
  %261 = vmatpush1.msra.mxu0 0.0
  %262 = vmatprep.subr.mxu0 0.0
  %263 = vmatpush1.msra.mxu0 0.0
  %264 = vmatprep.subr.mxu0 0.0
  %265 = vmatpush1.msra.mxu0 0.0
  %266 = vmatprep.subr.mxu0 0.0
  %267 = vmatpush1.msra.mxu0 0.0
  %268 = vmatprep.subr.mxu0 0.0
  %269 = vmatpush1.msra.mxu0 0.0
  %270 = vmatprep.subr.mxu0 0.0
  %271 = vmatpush1.msra.mxu0 0.0
  %272 = vmatprep.subr.mxu0 0.0
  %273 = vmatpush1.msra.mxu0 0.0
  %274 = vmatprep.subr.mxu0 0.0
  %275 = vmatpush1.msra.mxu0 0.0
  %276 = vmatprep.subr.mxu0 0.0
  %277 = vmatpush1.msra.mxu0 0.0
  %278 = vmatprep.subr.mxu0 0.0
  %279 = vmatpush1.msra.mxu0 0.0
  %280 = vmatprep.subr.mxu0 0.0
  %281 = vmatpush1.msra.mxu0 0.0
  %282 = vmatprep.subr.mxu0 0.0
  %283 = vmatpush1.msra.mxu0 0.0
  %284 = vmatprep.subr.mxu0 0.0
  %285 = vmatpush1.msra.mxu0 0.0
  %286 = vmatprep.subr.mxu0 0.0
  %287 = vmatpush1.msra.mxu0 0.0
  %288 = vmatprep.subr.mxu0 0.0
  %289 = vmatpush1.msra.mxu0 0.0
  %290 = vmatprep.subr.mxu0 0.0
  %291 = vmatpush1.msra.mxu0 0.0
  %292 = vmatprep.subr.mxu0 0.0
  %293 = vmatpush1.msra.mxu0 0.0
  %294 = vmatprep.subr.mxu0 0.0
  %295 = vmatpush1.msra.mxu0 0.0
  %296 = vmatprep.subr.mxu0 0.0
  %297 = vmatpush1.msra.mxu0 0.0
  %298 = vmatprep.subr.mxu0 0.0
  %299 = vmatpush1.msra.mxu0 0.0
  %300 = vmatprep.subr.mxu0 0.0
  %301 = vmatpush1.msra.mxu0 0.0
  %302 = vmatprep.subr.mxu0 0.0
  %303 = vmatpush1.msra.mxu0 0.0
  %304 = vmatprep.subr.mxu0 0.0
  %305 = vmatpush1.msra.mxu0 0.0
  %306 = vmatprep.subr.mxu0 0.0
  %307 = vmatpush1.msra.mxu0 0.0
  %308 = vmatprep.subr.mxu0 0.0
  %309 = vmatpush1.msra.mxu0 0.0
  %310 = vmatprep.subr.mxu0 0.0
  %311 = vmatpush1.msra.mxu0 0.0
  %312 = vmatprep.subr.mxu0 0.0
  %313 = vmatpush1.msra.mxu0 0.0
  %314 = vmatprep.mubr.f32.mxu0 0.0
  %315 = vmatmul.mubr.f32.gmra.mrb[0].mxu0 %v227
  %v316 = vpop.f32.mrb[0].mxu0
  %v317 = vadd.f32 %v185, %v316
  %v318 = vpop.f32.mrb[0].mxu0
  %319 = vmatprep.mubr.f32.mxu0 0.0
  %320 = vmatmul.mubr.f32.gmra.mrb[0].mxu0 %v230
  %v321 = vpop.f32.mrb[0].mxu0
  %v322 = vadd.f32 %v186, %v321
  %v323 = vpop.f32.mrb[0].mxu0
  %324 = vmatprep.mubr.f32.mxu0 0.0
  %325 = vmatmul.mubr.f32.gmra.mrb[0].mxu0 %v233
  %v326 = vpop.f32.mrb[0].mxu0
  %v327 = vadd.f32 %v187, %v326
  %v328 = vpop.f32.mrb[0].mxu0
  %329 = vmatprep.mubr.f32.mxu0 0.0
  %330 = vmatmul.mubr.f32.gmra.mrb[0].mxu0 %v236
  %v331 = vpop.f32.mrb[0].mxu0
  %v332 = vadd.f32 %v188, %v331
  %v333 = vpop.f32.mrb[0].mxu0
  %334 = vmatprep.mubr.f32.mxu0 0.0
  %335 = vmatmul.mubr.f32.gmra.mrb[0].mxu0 %v239
  %v336 = vpop.f32.mrb[0].mxu0
  %v337 = vadd.f32 %v189, %v336
  %v338 = vpop.f32.mrb[0].mxu0
  %339 = vmatprep.mubr.f32.mxu0 0.0
  %340 = vmatmul.mubr.f32.gmra.mrb[0].mxu0 %v242
  %v341 = vpop.f32.mrb[0].mxu0
  %v342 = vadd.f32 %v190, %v341
  %v343 = vpop.f32.mrb[0].mxu0
  %344 = vmatprep.mubr.f32.mxu0 0.0
  %345 = vmatmul.mubr.f32.gmra.mrb[0].mxu0 %v245
  %v346 = vpop.f32.mrb[0].mxu0
  %v347 = vadd.f32 %v191, %v346
  %v348 = vpop.f32.mrb[0].mxu0
  %349 = vmatprep.mubr.f32.mxu0 0.0
  %350 = vmatmul.mubr.f32.gmra.mrb[0].mxu0 %v248
  %v351 = vpop.f32.mrb[0].mxu0
  %v352 = vadd.f32 %v192, %v351
  %v353 = vpop.f32.mrb[0].mxu0
  %354 = vdwg.mxu0
  %v356 = vlaneseq
  %v357 = vshrl.u32 %v356, 7
  %v358 = vsub.s32 0, %v357
  %v359 = vrot.slane %v76, %v358
  %v361 = vadd.f32 %v317, %v359
  %v362 = vadd.f32 %v322, %v359
  %v363 = vadd.f32 %v327, %v359
  %v364 = vadd.f32 %v332, %v359
  %v365 = vadd.f32 %v337, %v359
  %v366 = vadd.f32 %v342, %v359
  %v367 = vadd.f32 %v347, %v359
  %v368 = vadd.f32 %v352, %v359
  %v369 = vmax.f32 %v361, 0.0
  %v370 = vmax.f32 %v362, 0.0
  %v371 = vmax.f32 %v363, 0.0
  %v372 = vmax.f32 %v364, 0.0
  %v373 = vmax.f32 %v365, 0.0
  %v374 = vmax.f32 %v366, 0.0
  %v375 = vmax.f32 %v367, 0.0
  %v376 = vmax.f32 %v368, 0.0
  %v378 = vlaneseq
  %v379 = vshrl.u32 %v378, 7
  %v380 = vsub.s32 0, %v379
  %v381 = vrot.slane %v79, %v380
  %vm383 = vcmask 130048
  %v385 = vsel %vm383, %v369, 0
  %v388 = vsel %vm383, %v370, 0
  %v391 = vsel %vm383, %v371, 0
  %v394 = vsel %vm383, %v372, 0
  %v397 = vsel %vm383, %v373, 0
  %v400 = vsel %vm383, %v374, 0
  %v403 = vsel %vm383, %v375, 0
  %v406 = vsel %vm383, %v376, 0
  %408 = vmatprep.subr.mxu0 0.0
  %409 = vmatpush1.msra.mxu0 %v77
  %410 = vmatprep.subr.mxu0 0.0
  %411 = vmatpush1.msra.mxu0 %v78
  %412 = vmatprep.subr.mxu0 0.0
  %413 = vmatpush1.msra.mxu0 0.0
  %414 = vmatprep.subr.mxu0 0.0
  %415 = vmatpush1.msra.mxu0 0.0
  %416 = vmatprep.subr.mxu0 0.0
  %417 = vmatpush1.msra.mxu0 0.0
  %418 = vmatprep.subr.mxu0 0.0
  %419 = vmatpush1.msra.mxu0 0.0
  %420 = vmatprep.subr.mxu0 0.0
  %421 = vmatpush1.msra.mxu0 0.0
  %422 = vmatprep.subr.mxu0 0.0
  %423 = vmatpush1.msra.mxu0 0.0
  %424 = vmatprep.subr.mxu0 0.0
  %425 = vmatpush1.msra.mxu0 0.0
  %426 = vmatprep.subr.mxu0 0.0
  %427 = vmatpush1.msra.mxu0 0.0
  %428 = vmatprep.subr.mxu0 0.0
  %429 = vmatpush1.msra.mxu0 0.0
  %430 = vmatprep.subr.mxu0 0.0
  %431 = vmatpush1.msra.mxu0 0.0
  %432 = vmatprep.subr.mxu0 0.0
  %433 = vmatpush1.msra.mxu0 0.0
  %434 = vmatprep.subr.mxu0 0.0
  %435 = vmatpush1.msra.mxu0 0.0
  %436 = vmatprep.subr.mxu0 0.0
  %437 = vmatpush1.msra.mxu0 0.0
  %438 = vmatprep.subr.mxu0 0.0
  %439 = vmatpush1.msra.mxu0 0.0
  %440 = vmatprep.subr.mxu0 0.0
  %441 = vmatpush1.msra.mxu0 0.0
  %442 = vmatprep.subr.mxu0 0.0
  %443 = vmatpush1.msra.mxu0 0.0
  %444 = vmatprep.subr.mxu0 0.0
  %445 = vmatpush1.msra.mxu0 0.0
  %446 = vmatprep.subr.mxu0 0.0
  %447 = vmatpush1.msra.mxu0 0.0
  %448 = vmatprep.subr.mxu0 0.0
  %449 = vmatpush1.msra.mxu0 0.0
  %450 = vmatprep.subr.mxu0 0.0
  %451 = vmatpush1.msra.mxu0 0.0
  %452 = vmatprep.subr.mxu0 0.0
  %453 = vmatpush1.msra.mxu0 0.0
  %454 = vmatprep.subr.mxu0 0.0
  %455 = vmatpush1.msra.mxu0 0.0
  %456 = vmatprep.subr.mxu0 0.0
  %457 = vmatpush1.msra.mxu0 0.0
  %458 = vmatprep.subr.mxu0 0.0
  %459 = vmatpush1.msra.mxu0 0.0
  %460 = vmatprep.subr.mxu0 0.0
  %461 = vmatpush1.msra.mxu0 0.0
  %462 = vmatprep.subr.mxu0 0.0
  %463 = vmatpush1.msra.mxu0 0.0
  %464 = vmatprep.subr.mxu0 0.0
  %465 = vmatpush1.msra.mxu0 0.0
  %466 = vmatprep.subr.mxu0 0.0
  %467 = vmatpush1.msra.mxu0 0.0
  %468 = vmatprep.subr.mxu0 0.0
  %469 = vmatpush1.msra.mxu0 0.0
  %470 = vmatprep.subr.mxu0 0.0
  %471 = vmatpush1.msra.mxu0 0.0
  %472 = vmatprep.mubr.f32.mxu0 0.0
  %473 = vmatmul.mubr.f32.gmra.mrb[0].mxu0 %v385
  %v474 = vpop.f32.mrb[0].mxu0
  %v475 = vadd.f32 %v381, %v474
  %v476 = vpop.f32.mrb[0].mxu0
  %477 = vmatprep.mubr.f32.mxu0 0.0
  %478 = vmatmul.mubr.f32.gmra.mrb[0].mxu0 %v388
  %v479 = vpop.f32.mrb[0].mxu0
  %v480 = vadd.f32 %v381, %v479
  %v481 = vpop.f32.mrb[0].mxu0
  %482 = vmatprep.mubr.f32.mxu0 0.0
  %483 = vmatmul.mubr.f32.gmra.mrb[0].mxu0 %v391
  %v484 = vpop.f32.mrb[0].mxu0
  %v485 = vadd.f32 %v381, %v484
  %v486 = vpop.f32.mrb[0].mxu0
  %487 = vmatprep.mubr.f32.mxu0 0.0
  %488 = vmatmul.mubr.f32.gmra.mrb[0].mxu0 %v394
  %v489 = vpop.f32.mrb[0].mxu0
  %v490 = vadd.f32 %v381, %v489
  %v491 = vpop.f32.mrb[0].mxu0
  %492 = vmatprep.mubr.f32.mxu0 0.0
  %493 = vmatmul.mubr.f32.gmra.mrb[0].mxu0 %v397
  %v494 = vpop.f32.mrb[0].mxu0
  %v495 = vadd.f32 %v381, %v494
  %v496 = vpop.f32.mrb[0].mxu0
  %497 = vmatprep.mubr.f32.mxu0 0.0
  %498 = vmatmul.mubr.f32.gmra.mrb[0].mxu0 %v400
  %v499 = vpop.f32.mrb[0].mxu0
  %v500 = vadd.f32 %v381, %v499
  %v501 = vpop.f32.mrb[0].mxu0
  %502 = vmatprep.mubr.f32.mxu0 0.0
  %503 = vmatmul.mubr.f32.gmra.mrb[0].mxu0 %v403
  %v504 = vpop.f32.mrb[0].mxu0
  %v505 = vadd.f32 %v381, %v504
  %v506 = vpop.f32.mrb[0].mxu0
  %507 = vmatprep.mubr.f32.mxu0 0.0
  %508 = vmatmul.mubr.f32.gmra.mrb[0].mxu0 %v406
  %v509 = vpop.f32.mrb[0].mxu0
  %v510 = vadd.f32 %v381, %v509
  %v511 = vpop.f32.mrb[0].mxu0
  %512 = vdwg.mxu0
  %v513 = vmax.f32 %v475, 0.0
  %v514 = vmax.f32 %v480, 0.0
  %v515 = vmax.f32 %v485, 0.0
  %v516 = vmax.f32 %v490, 0.0
  %v517 = vmax.f32 %v495, 0.0
  %v518 = vmax.f32 %v500, 0.0
  %v519 = vmax.f32 %v505, 0.0
  %v520 = vmax.f32 %v510, 0.0
  %522 = vset.pattern.permute.xlu0 0
  %523 = vperm.xlu0 %522, %v66
  %v524 = vpop.permute.xlu0 %523
  %527 = vset.pattern.permute.xlu0 0
  %528 = vperm.xlu0 %527, %v67
  %v529 = vpop.permute.xlu0 %528
  %532 = vset.pattern.permute.xlu0 0
  %533 = vperm.xlu0 %532, %v68
  %v534 = vpop.permute.xlu0 %533
  %537 = vset.pattern.permute.xlu0 0
  %538 = vperm.xlu0 %537, %v69
  %v539 = vpop.permute.xlu0 %538
  %542 = vset.pattern.permute.xlu0 0
  %543 = vperm.xlu0 %542, %v70
  %v544 = vpop.permute.xlu0 %543
  %547 = vset.pattern.permute.xlu0 0
  %548 = vperm.xlu0 %547, %v71
  %v549 = vpop.permute.xlu0 %548
  %552 = vset.pattern.permute.xlu0 0
  %553 = vperm.xlu0 %552, %v72
  %v554 = vpop.permute.xlu0 %553
  %557 = vset.pattern.permute.xlu0 0
  %558 = vperm.xlu0 %557, %v73
  %v559 = vpop.permute.xlu0 %558
  %v561 = vmul.f32 %v513, %v524
  %v562 = vmul.f32 %v514, %v529
  %v563 = vmul.f32 %v515, %v534
  %v564 = vmul.f32 %v516, %v539
  %v565 = vmul.f32 %v517, %v544
  %v566 = vmul.f32 %v518, %v549
  %v567 = vmul.f32 %v519, %v554
  %v568 = vmul.f32 %v520, %v559
  %v569 = vmax.f32 %v561, %v562
  %v570 = vmax.f32 %v569, %v563
  %v571 = vmax.f32 %v570, %v564
  %v572 = vmax.f32 %v571, %v565
  %v573 = vmax.f32 %v572, %v566
  %v574 = vmax.f32 %v573, %v567
  %v575 = vmax.f32 %v574, %v568
  %v576 = vlaneseq
  %v577 = vshrl.u32 %v576, 7
  %v578 = vsub.s32 0, %v577
  %v579 = vrot.slane %v80, %v578
  %v580 = vmul.f32 %v198, %v579
  %v581 = vlaneseq
  %v582 = vshrl.u32 %v581, 7
  %v583 = vsub.s32 1, %v582
  %v584 = vrot.slane %v80, %v583
  %v585 = vmul.f32 %v207, %v584
  %v586 = vadd.f32 %v580, %v585
  %v587 = vlaneseq
  %v588 = vshrl.u32 %v587, 7
  %v589 = vsub.s32 2, %v588
  %v590 = vrot.slane %v80, %v589
  %v591 = vmul.f32 %v217, %v590
  %v592 = vadd.f32 %v586, %v591
  %vm593 = vcmask 261120
  %v595 = vsel %vm593, %v575, 0
  %597 = vmatprep.subr.mxu0 0.0
  %598 = vmatpush1.msra.mxu0 %v81
  %599 = vmatprep.subr.mxu0 0.0
  %600 = vmatpush1.msra.mxu0 %v82
  %601 = vmatprep.subr.mxu0 0.0
  %602 = vmatpush1.msra.mxu0 %v83
  %603 = vmatprep.subr.mxu0 0.0
  %604 = vmatpush1.msra.mxu0 %v84
  %605 = vmatprep.subr.mxu0 0.0
  %606 = vmatpush1.msra.mxu0 0.0
  %607 = vmatprep.subr.mxu0 0.0
  %608 = vmatpush1.msra.mxu0 0.0
  %609 = vmatprep.subr.mxu0 0.0
  %610 = vmatpush1.msra.mxu0 0.0
  %611 = vmatprep.subr.mxu0 0.0
  %612 = vmatpush1.msra.mxu0 0.0
  %613 = vmatprep.subr.mxu0 0.0
  %614 = vmatpush1.msra.mxu0 0.0
  %615 = vmatprep.subr.mxu0 0.0
  %616 = vmatpush1.msra.mxu0 0.0
  %617 = vmatprep.subr.mxu0 0.0
  %618 = vmatpush1.msra.mxu0 0.0
  %619 = vmatprep.subr.mxu0 0.0
  %620 = vmatpush1.msra.mxu0 0.0
  %621 = vmatprep.subr.mxu0 0.0
  %622 = vmatpush1.msra.mxu0 0.0
  %623 = vmatprep.subr.mxu0 0.0
  %624 = vmatpush1.msra.mxu0 0.0
  %625 = vmatprep.subr.mxu0 0.0
  %626 = vmatpush1.msra.mxu0 0.0
  %627 = vmatprep.subr.mxu0 0.0
  %628 = vmatpush1.msra.mxu0 0.0
  %629 = vmatprep.subr.mxu0 0.0
  %630 = vmatpush1.msra.mxu0 0.0
  %631 = vmatprep.subr.mxu0 0.0
  %632 = vmatpush1.msra.mxu0 0.0
  %633 = vmatprep.subr.mxu0 0.0
  %634 = vmatpush1.msra.mxu0 0.0
  %635 = vmatprep.subr.mxu0 0.0
  %636 = vmatpush1.msra.mxu0 0.0
  %637 = vmatprep.subr.mxu0 0.0
  %638 = vmatpush1.msra.mxu0 0.0
  %639 = vmatprep.subr.mxu0 0.0
  %640 = vmatpush1.msra.mxu0 0.0
  %641 = vmatprep.subr.mxu0 0.0
  %642 = vmatpush1.msra.mxu0 0.0
  %643 = vmatprep.subr.mxu0 0.0
  %644 = vmatpush1.msra.mxu0 0.0
  %645 = vmatprep.subr.mxu0 0.0
  %646 = vmatpush1.msra.mxu0 0.0
  %647 = vmatprep.subr.mxu0 0.0
  %648 = vmatpush1.msra.mxu0 0.0
  %649 = vmatprep.subr.mxu0 0.0
  %650 = vmatpush1.msra.mxu0 0.0
  %651 = vmatprep.subr.mxu0 0.0
  %652 = vmatpush1.msra.mxu0 0.0
  %653 = vmatprep.subr.mxu0 0.0
  %654 = vmatpush1.msra.mxu0 0.0
  %655 = vmatprep.subr.mxu0 0.0
  %656 = vmatpush1.msra.mxu0 0.0
  %657 = vmatprep.subr.mxu0 0.0
  %658 = vmatpush1.msra.mxu0 0.0
  %659 = vmatprep.subr.mxu0 0.0
  %660 = vmatpush1.msra.mxu0 0.0
  %661 = vmatprep.mubr.f32.mxu0 0.0
  %662 = vmatmul.mubr.f32.gmra.mrb[0].mxu0 %v595
  %v663 = vpop.f32.mrb[0].mxu0
  %v664 = vadd.f32 0.0, %v663
  %v665 = vpop.f32.mrb[0].mxu0
  %666 = vdwg.mxu0
  %v667 = vadd.f32 %v592, %v664
  %v669 = vlaneseq
  %v670 = vshrl.u32 %v669, 7
  %v671 = vsub.s32 0, %v670
  %v672 = vrot.slane %v85, %v671
  %v674 = vadd.f32 %v667, %v672
  %v675 = vmax.f32 %v674, 0.0
  %v677 = vlaneseq
  %v678 = vshrl.u32 %v677, 7
  %v679 = vsub.s32 0, %v678
  %v680 = vrot.slane %v88, %v679
  %v683 = vsel %vm383, %v675, 0
  %685 = vmatprep.subr.mxu0 0.0
  %686 = vmatpush1.msra.mxu0 %v86
  %687 = vmatprep.subr.mxu0 0.0
  %688 = vmatpush1.msra.mxu0 %v87
  %689 = vmatprep.subr.mxu0 0.0
  %690 = vmatpush1.msra.mxu0 0.0
  %691 = vmatprep.subr.mxu0 0.0
  %692 = vmatpush1.msra.mxu0 0.0
  %693 = vmatprep.subr.mxu0 0.0
  %694 = vmatpush1.msra.mxu0 0.0
  %695 = vmatprep.subr.mxu0 0.0
  %696 = vmatpush1.msra.mxu0 0.0
  %697 = vmatprep.subr.mxu0 0.0
  %698 = vmatpush1.msra.mxu0 0.0
  %699 = vmatprep.subr.mxu0 0.0
  %700 = vmatpush1.msra.mxu0 0.0
  %701 = vmatprep.subr.mxu0 0.0
  %702 = vmatpush1.msra.mxu0 0.0
  %703 = vmatprep.subr.mxu0 0.0
  %704 = vmatpush1.msra.mxu0 0.0
  %705 = vmatprep.subr.mxu0 0.0
  %706 = vmatpush1.msra.mxu0 0.0
  %707 = vmatprep.subr.mxu0 0.0
  %708 = vmatpush1.msra.mxu0 0.0
  %709 = vmatprep.subr.mxu0 0.0
  %710 = vmatpush1.msra.mxu0 0.0
  %711 = vmatprep.subr.mxu0 0.0
  %712 = vmatpush1.msra.mxu0 0.0
  %713 = vmatprep.subr.mxu0 0.0
  %714 = vmatpush1.msra.mxu0 0.0
  %715 = vmatprep.subr.mxu0 0.0
  %716 = vmatpush1.msra.mxu0 0.0
  %717 = vmatprep.subr.mxu0 0.0
  %718 = vmatpush1.msra.mxu0 0.0
  %719 = vmatprep.subr.mxu0 0.0
  %720 = vmatpush1.msra.mxu0 0.0
  %721 = vmatprep.subr.mxu0 0.0
  %722 = vmatpush1.msra.mxu0 0.0
  %723 = vmatprep.subr.mxu0 0.0
  %724 = vmatpush1.msra.mxu0 0.0
  %725 = vmatprep.subr.mxu0 0.0
  %726 = vmatpush1.msra.mxu0 0.0
  %727 = vmatprep.subr.mxu0 0.0
  %728 = vmatpush1.msra.mxu0 0.0
  %729 = vmatprep.subr.mxu0 0.0
  %730 = vmatpush1.msra.mxu0 0.0
  %731 = vmatprep.subr.mxu0 0.0
  %732 = vmatpush1.msra.mxu0 0.0
  %733 = vmatprep.subr.mxu0 0.0
  %734 = vmatpush1.msra.mxu0 0.0
  %735 = vmatprep.subr.mxu0 0.0
  %736 = vmatpush1.msra.mxu0 0.0
  %737 = vmatprep.subr.mxu0 0.0
  %738 = vmatpush1.msra.mxu0 0.0
  %739 = vmatprep.subr.mxu0 0.0
  %740 = vmatpush1.msra.mxu0 0.0
  %741 = vmatprep.subr.mxu0 0.0
  %742 = vmatpush1.msra.mxu0 0.0
  %743 = vmatprep.subr.mxu0 0.0
  %744 = vmatpush1.msra.mxu0 0.0
  %745 = vmatprep.subr.mxu0 0.0
  %746 = vmatpush1.msra.mxu0 0.0
  %747 = vmatprep.subr.mxu0 0.0
  %748 = vmatpush1.msra.mxu0 0.0
  %749 = vmatprep.mubr.f32.mxu0 0.0
  %750 = vmatmul.mubr.f32.gmra.mrb[0].mxu0 %v683
  %v751 = vpop.f32.mrb[0].mxu0
  %v752 = vadd.f32 %v680, %v751
  %v753 = vpop.f32.mrb[0].mxu0
  %754 = vdwg.mxu0
  %v755 = vxor.u32 %v752, 2147483648
  %v756 = vmul.f32 %v755, 1.442695
  %v757 = vpow.pop %v756
  %v758 = vadd.f32 %v757, 1.0
  %v759 = vrcp.pop %v758
  %v760 = vmul.f32 1.0, %v759
  %vm761 = vcmp.lt.s32.totalorder %v194, 2
  %763 = vset.pattern.permute.xlu0 0
  %764 = vperm.xlu0 %763, %v760
  %v765 = vpop.permute.xlu0 %764
  %v767 = vsel %vm761, %v49, %v765
  %769 = vset.pattern.permute.xlu0 0
  %770 = vperm.xlu0 %769, %v767
  %v771 = vpop.permute.xlu0 %770
  %v773 = vmul.f32 %v771, %v203
  %774 = vset.pattern.permute.xlu0 1
  %775 = vperm.xlu0 %774, %v767
  %v776 = vpop.permute.xlu0 %775
  %v778 = vmul.f32 %v776, %v212
  %v779 = vadd.f32 %v773, %v778
  %780 = vset.pattern.permute.xlu0 2
  %781 = vperm.xlu0 %780, %v767
  %v782 = vpop.permute.xlu0 %781
  %v784 = vmul.f32 %v782, %v222
  %v785 = vadd.f32 %v779, %v784
  %786 = vmatprep.subr.mxu0 0.0
  %787 = vmatpush1.msra.mxu0 %v785
  %788 = vmatprep.subr.mxu0 0.0
  %789 = vmatpush1.msra.mxu0 0.0
  %790 = vmatprep.subr.mxu0 0.0
  %791 = vmatpush1.msra.mxu0 0.0
  %792 = vmatprep.subr.mxu0 0.0
  %793 = vmatpush1.msra.mxu0 0.0
  %794 = vmatprep.subr.mxu0 0.0
  %795 = vmatpush1.msra.mxu0 0.0
  %796 = vmatprep.subr.mxu0 0.0
  %797 = vmatpush1.msra.mxu0 0.0
  %798 = vmatprep.subr.mxu0 0.0
  %799 = vmatpush1.msra.mxu0 0.0
  %800 = vmatprep.subr.mxu0 0.0
  %801 = vmatpush1.msra.mxu0 0.0
  %802 = vmatprep.subr.mxu0 0.0
  %803 = vmatpush1.msra.mxu0 0.0
  %804 = vmatprep.subr.mxu0 0.0
  %805 = vmatpush1.msra.mxu0 0.0
  %806 = vmatprep.subr.mxu0 0.0
  %807 = vmatpush1.msra.mxu0 0.0
  %808 = vmatprep.subr.mxu0 0.0
  %809 = vmatpush1.msra.mxu0 0.0
  %810 = vmatprep.subr.mxu0 0.0
  %811 = vmatpush1.msra.mxu0 0.0
  %812 = vmatprep.subr.mxu0 0.0
  %813 = vmatpush1.msra.mxu0 0.0
  %814 = vmatprep.subr.mxu0 0.0
  %815 = vmatpush1.msra.mxu0 0.0
  %816 = vmatprep.subr.mxu0 0.0
  %817 = vmatpush1.msra.mxu0 0.0
  %818 = vmatprep.subr.mxu0 0.0
  %819 = vmatpush1.msra.mxu0 0.0
  %820 = vmatprep.subr.mxu0 0.0
  %821 = vmatpush1.msra.mxu0 0.0
  %822 = vmatprep.subr.mxu0 0.0
  %823 = vmatpush1.msra.mxu0 0.0
  %824 = vmatprep.subr.mxu0 0.0
  %825 = vmatpush1.msra.mxu0 0.0
  %826 = vmatprep.subr.mxu0 0.0
  %827 = vmatpush1.msra.mxu0 0.0
  %828 = vmatprep.subr.mxu0 0.0
  %829 = vmatpush1.msra.mxu0 0.0
  %830 = vmatprep.subr.mxu0 0.0
  %831 = vmatpush1.msra.mxu0 0.0
  %832 = vmatprep.subr.mxu0 0.0
  %833 = vmatpush1.msra.mxu0 0.0
  %834 = vmatprep.subr.mxu0 0.0
  %835 = vmatpush1.msra.mxu0 0.0
  %836 = vmatprep.subr.mxu0 0.0
  %837 = vmatpush1.msra.mxu0 0.0
  %838 = vmatprep.subr.mxu0 0.0
  %839 = vmatpush1.msra.mxu0 0.0
  %840 = vmatprep.subr.mxu0 0.0
  %841 = vmatpush1.msra.mxu0 0.0
  %842 = vmatprep.subr.mxu0 0.0
  %843 = vmatpush1.msra.mxu0 0.0
  %844 = vmatprep.subr.mxu0 0.0
  %845 = vmatpush1.msra.mxu0 0.0
  %846 = vmatprep.subr.mxu0 0.0
  %847 = vmatpush1.msra.mxu0 0.0
  %848 = vmatprep.subr.mxu0 0.0
  %849 = vmatpush1.msra.mxu0 0.0
  %850 = vmatprep.mubr.f32.mxu0 0.0
  %851 = vmatmul.mubr.f32.gmra.mrb[0].mxu0 %v227
  %v852 = vpop.f32.mrb[0].mxu0
  %v853 = vadd.f32 %v185, %v852
  %v854 = vpop.f32.mrb[0].mxu0
  %855 = vmatprep.mubr.f32.mxu0 0.0
  %856 = vmatmul.mubr.f32.gmra.mrb[0].mxu0 %v230
  %v857 = vpop.f32.mrb[0].mxu0
  %v858 = vadd.f32 %v186, %v857
  %v859 = vpop.f32.mrb[0].mxu0
  %860 = vmatprep.mubr.f32.mxu0 0.0
  %861 = vmatmul.mubr.f32.gmra.mrb[0].mxu0 %v233
  %v862 = vpop.f32.mrb[0].mxu0
  %v863 = vadd.f32 %v187, %v862
  %v864 = vpop.f32.mrb[0].mxu0
  %865 = vmatprep.mubr.f32.mxu0 0.0
  %866 = vmatmul.mubr.f32.gmra.mrb[0].mxu0 %v236
  %v867 = vpop.f32.mrb[0].mxu0
  %v868 = vadd.f32 %v188, %v867
  %v869 = vpop.f32.mrb[0].mxu0
  %870 = vmatprep.mubr.f32.mxu0 0.0
  %871 = vmatmul.mubr.f32.gmra.mrb[0].mxu0 %v239
  %v872 = vpop.f32.mrb[0].mxu0
  %v873 = vadd.f32 %v189, %v872
  %v874 = vpop.f32.mrb[0].mxu0
  %875 = vmatprep.mubr.f32.mxu0 0.0
  %876 = vmatmul.mubr.f32.gmra.mrb[0].mxu0 %v242
  %v877 = vpop.f32.mrb[0].mxu0
  %v878 = vadd.f32 %v190, %v877
  %v879 = vpop.f32.mrb[0].mxu0
  %880 = vmatprep.mubr.f32.mxu0 0.0
  %881 = vmatmul.mubr.f32.gmra.mrb[0].mxu0 %v245
  %v882 = vpop.f32.mrb[0].mxu0
  %v883 = vadd.f32 %v191, %v882
  %v884 = vpop.f32.mrb[0].mxu0
  %885 = vmatprep.mubr.f32.mxu0 0.0
  %886 = vmatmul.mubr.f32.gmra.mrb[0].mxu0 %v248
  %v887 = vpop.f32.mrb[0].mxu0
  %v888 = vadd.f32 %v192, %v887
  %v889 = vpop.f32.mrb[0].mxu0
  %890 = vdwg.mxu0
  %v891 = vadd.f32 %v853, %v359
  %v892 = vadd.f32 %v858, %v359
  %v893 = vadd.f32 %v863, %v359
  %v894 = vadd.f32 %v868, %v359
  %v895 = vadd.f32 %v873, %v359
  %v896 = vadd.f32 %v878, %v359
  %v897 = vadd.f32 %v883, %v359
  %v898 = vadd.f32 %v888, %v359
  %v899 = vmax.f32 %v891, 0.0
  %v900 = vmax.f32 %v892, 0.0
  %v901 = vmax.f32 %v893, 0.0
  %v902 = vmax.f32 %v894, 0.0
  %v903 = vmax.f32 %v895, 0.0
  %v904 = vmax.f32 %v896, 0.0
  %v905 = vmax.f32 %v897, 0.0
  %v906 = vmax.f32 %v898, 0.0
  %v908 = vsel %vm383, %v899, 0
  %v911 = vsel %vm383, %v900, 0
  %v914 = vsel %vm383, %v901, 0
  %v917 = vsel %vm383, %v902, 0
  %v920 = vsel %vm383, %v903, 0
  %v923 = vsel %vm383, %v904, 0
  %v926 = vsel %vm383, %v905, 0
  %v929 = vsel %vm383, %v906, 0
  %931 = vmatprep.subr.mxu0 0.0
  %932 = vmatpush1.msra.mxu0 %v77
  %933 = vmatprep.subr.mxu0 0.0
  %934 = vmatpush1.msra.mxu0 %v78
  %935 = vmatprep.subr.mxu0 0.0
  %936 = vmatpush1.msra.mxu0 0.0
  %937 = vmatprep.subr.mxu0 0.0
  %938 = vmatpush1.msra.mxu0 0.0
  %939 = vmatprep.subr.mxu0 0.0
  %940 = vmatpush1.msra.mxu0 0.0
  %941 = vmatprep.subr.mxu0 0.0
  %942 = vmatpush1.msra.mxu0 0.0
  %943 = vmatprep.subr.mxu0 0.0
  %944 = vmatpush1.msra.mxu0 0.0
  %945 = vmatprep.subr.mxu0 0.0
  %946 = vmatpush1.msra.mxu0 0.0
  %947 = vmatprep.subr.mxu0 0.0
  %948 = vmatpush1.msra.mxu0 0.0
  %949 = vmatprep.subr.mxu0 0.0
  %950 = vmatpush1.msra.mxu0 0.0
  %951 = vmatprep.subr.mxu0 0.0
  %952 = vmatpush1.msra.mxu0 0.0
  %953 = vmatprep.subr.mxu0 0.0
  %954 = vmatpush1.msra.mxu0 0.0
  %955 = vmatprep.subr.mxu0 0.0
  %956 = vmatpush1.msra.mxu0 0.0
  %957 = vmatprep.subr.mxu0 0.0
  %958 = vmatpush1.msra.mxu0 0.0
  %959 = vmatprep.subr.mxu0 0.0
  %960 = vmatpush1.msra.mxu0 0.0
  %961 = vmatprep.subr.mxu0 0.0
  %962 = vmatpush1.msra.mxu0 0.0
  %963 = vmatprep.subr.mxu0 0.0
  %964 = vmatpush1.msra.mxu0 0.0
  %965 = vmatprep.subr.mxu0 0.0
  %966 = vmatpush1.msra.mxu0 0.0
  %967 = vmatprep.subr.mxu0 0.0
  %968 = vmatpush1.msra.mxu0 0.0
  %969 = vmatprep.subr.mxu0 0.0
  %970 = vmatpush1.msra.mxu0 0.0
  %971 = vmatprep.subr.mxu0 0.0
  %972 = vmatpush1.msra.mxu0 0.0
  %973 = vmatprep.subr.mxu0 0.0
  %974 = vmatpush1.msra.mxu0 0.0
  %975 = vmatprep.subr.mxu0 0.0
  %976 = vmatpush1.msra.mxu0 0.0
  %977 = vmatprep.subr.mxu0 0.0
  %978 = vmatpush1.msra.mxu0 0.0
  %979 = vmatprep.subr.mxu0 0.0
  %980 = vmatpush1.msra.mxu0 0.0
  %981 = vmatprep.subr.mxu0 0.0
  %982 = vmatpush1.msra.mxu0 0.0
  %983 = vmatprep.subr.mxu0 0.0
  %984 = vmatpush1.msra.mxu0 0.0
  %985 = vmatprep.subr.mxu0 0.0
  %986 = vmatpush1.msra.mxu0 0.0
  %987 = vmatprep.subr.mxu0 0.0
  %988 = vmatpush1.msra.mxu0 0.0
  %989 = vmatprep.subr.mxu0 0.0
  %990 = vmatpush1.msra.mxu0 0.0
  %991 = vmatprep.subr.mxu0 0.0
  %992 = vmatpush1.msra.mxu0 0.0
  %993 = vmatprep.subr.mxu0 0.0
  %994 = vmatpush1.msra.mxu0 0.0
  %995 = vmatprep.mubr.f32.mxu0 0.0
  %996 = vmatmul.mubr.f32.gmra.mrb[0].mxu0 %v908
  %v997 = vpop.f32.mrb[0].mxu0
  %v998 = vadd.f32 %v381, %v997
  %v999 = vpop.f32.mrb[0].mxu0
  %1000 = vmatprep.mubr.f32.mxu0 0.0
  %1001 = vmatmul.mubr.f32.gmra.mrb[0].mxu0 %v911
  %v1002 = vpop.f32.mrb[0].mxu0
  %v1003 = vadd.f32 %v381, %v1002
  %v1004 = vpop.f32.mrb[0].mxu0
  %1005 = vmatprep.mubr.f32.mxu0 0.0
  %1006 = vmatmul.mubr.f32.gmra.mrb[0].mxu0 %v914
  %v1007 = vpop.f32.mrb[0].mxu0
  %v1008 = vadd.f32 %v381, %v1007
  %v1009 = vpop.f32.mrb[0].mxu0
  %1010 = vmatprep.mubr.f32.mxu0 0.0
  %1011 = vmatmul.mubr.f32.gmra.mrb[0].mxu0 %v917
  %v1012 = vpop.f32.mrb[0].mxu0
  %v1013 = vadd.f32 %v381, %v1012
  %v1014 = vpop.f32.mrb[0].mxu0
  %1015 = vmatprep.mubr.f32.mxu0 0.0
  %1016 = vmatmul.mubr.f32.gmra.mrb[0].mxu0 %v920
  %v1017 = vpop.f32.mrb[0].mxu0
  %v1018 = vadd.f32 %v381, %v1017
  %v1019 = vpop.f32.mrb[0].mxu0
  %1020 = vmatprep.mubr.f32.mxu0 0.0
  %1021 = vmatmul.mubr.f32.gmra.mrb[0].mxu0 %v923
  %v1022 = vpop.f32.mrb[0].mxu0
  %v1023 = vadd.f32 %v381, %v1022
  %v1024 = vpop.f32.mrb[0].mxu0
  %1025 = vmatprep.mubr.f32.mxu0 0.0
  %1026 = vmatmul.mubr.f32.gmra.mrb[0].mxu0 %v926
  %v1027 = vpop.f32.mrb[0].mxu0
  %v1028 = vadd.f32 %v381, %v1027
  %v1029 = vpop.f32.mrb[0].mxu0
  %1030 = vmatprep.mubr.f32.mxu0 0.0
  %1031 = vmatmul.mubr.f32.gmra.mrb[0].mxu0 %v929
  %v1032 = vpop.f32.mrb[0].mxu0
  %v1033 = vadd.f32 %v381, %v1032
  %v1034 = vpop.f32.mrb[0].mxu0
  %1035 = vdwg.mxu0
  %v1036 = vmax.f32 %v998, 0.0
  %v1037 = vmax.f32 %v1003, 0.0
  %v1038 = vmax.f32 %v1008, 0.0
  %v1039 = vmax.f32 %v1013, 0.0
  %v1040 = vmax.f32 %v1018, 0.0
  %v1041 = vmax.f32 %v1023, 0.0
  %v1042 = vmax.f32 %v1028, 0.0
  %v1043 = vmax.f32 %v1033, 0.0
  %v1044 = vmul.f32 %v1036, %v524
  %v1045 = vmul.f32 %v1037, %v529
  %v1046 = vmul.f32 %v1038, %v534
  %v1047 = vmul.f32 %v1039, %v539
  %v1048 = vmul.f32 %v1040, %v544
  %v1049 = vmul.f32 %v1041, %v549
  %v1050 = vmul.f32 %v1042, %v554
  %v1051 = vmul.f32 %v1043, %v559
  %v1052 = vmax.f32 %v1044, %v1045
  %v1053 = vmax.f32 %v1052, %v1046
  %v1054 = vmax.f32 %v1053, %v1047
  %v1055 = vmax.f32 %v1054, %v1048
  %v1056 = vmax.f32 %v1055, %v1049
  %v1057 = vmax.f32 %v1056, %v1050
  %v1058 = vmax.f32 %v1057, %v1051
  %v1059 = vmul.f32 %v771, %v579
  %v1060 = vmul.f32 %v776, %v584
  %v1061 = vadd.f32 %v1059, %v1060
  %v1062 = vmul.f32 %v782, %v590
  %v1063 = vadd.f32 %v1061, %v1062
  %v1065 = vsel %vm593, %v1058, 0
  %1067 = vmatprep.subr.mxu0 0.0
  %1068 = vmatpush1.msra.mxu0 %v81
  %1069 = vmatprep.subr.mxu0 0.0
  %1070 = vmatpush1.msra.mxu0 %v82
  %1071 = vmatprep.subr.mxu0 0.0
  %1072 = vmatpush1.msra.mxu0 %v83
  %1073 = vmatprep.subr.mxu0 0.0
  %1074 = vmatpush1.msra.mxu0 %v84
  %1075 = vmatprep.subr.mxu0 0.0
  %1076 = vmatpush1.msra.mxu0 0.0
  %1077 = vmatprep.subr.mxu0 0.0
  %1078 = vmatpush1.msra.mxu0 0.0
  %1079 = vmatprep.subr.mxu0 0.0
  %1080 = vmatpush1.msra.mxu0 0.0
  %1081 = vmatprep.subr.mxu0 0.0
  %1082 = vmatpush1.msra.mxu0 0.0
  %1083 = vmatprep.subr.mxu0 0.0
  %1084 = vmatpush1.msra.mxu0 0.0
  %1085 = vmatprep.subr.mxu0 0.0
  %1086 = vmatpush1.msra.mxu0 0.0
  %1087 = vmatprep.subr.mxu0 0.0
  %1088 = vmatpush1.msra.mxu0 0.0
  %1089 = vmatprep.subr.mxu0 0.0
  %1090 = vmatpush1.msra.mxu0 0.0
  %1091 = vmatprep.subr.mxu0 0.0
  %1092 = vmatpush1.msra.mxu0 0.0
  %1093 = vmatprep.subr.mxu0 0.0
  %1094 = vmatpush1.msra.mxu0 0.0
  %1095 = vmatprep.subr.mxu0 0.0
  %1096 = vmatpush1.msra.mxu0 0.0
  %1097 = vmatprep.subr.mxu0 0.0
  %1098 = vmatpush1.msra.mxu0 0.0
  %1099 = vmatprep.subr.mxu0 0.0
  %1100 = vmatpush1.msra.mxu0 0.0
  %1101 = vmatprep.subr.mxu0 0.0
  %1102 = vmatpush1.msra.mxu0 0.0
  %1103 = vmatprep.subr.mxu0 0.0
  %1104 = vmatpush1.msra.mxu0 0.0
  %1105 = vmatprep.subr.mxu0 0.0
  %1106 = vmatpush1.msra.mxu0 0.0
  %1107 = vmatprep.subr.mxu0 0.0
  %1108 = vmatpush1.msra.mxu0 0.0
  %1109 = vmatprep.subr.mxu0 0.0
  %1110 = vmatpush1.msra.mxu0 0.0
  %1111 = vmatprep.subr.mxu0 0.0
  %1112 = vmatpush1.msra.mxu0 0.0
  %1113 = vmatprep.subr.mxu0 0.0
  %1114 = vmatpush1.msra.mxu0 0.0
  %1115 = vmatprep.subr.mxu0 0.0
  %1116 = vmatpush1.msra.mxu0 0.0
  %1117 = vmatprep.subr.mxu0 0.0
  %1118 = vmatpush1.msra.mxu0 0.0
  %1119 = vmatprep.subr.mxu0 0.0
  %1120 = vmatpush1.msra.mxu0 0.0
  %1121 = vmatprep.subr.mxu0 0.0
  %1122 = vmatpush1.msra.mxu0 0.0
  %1123 = vmatprep.subr.mxu0 0.0
  %1124 = vmatpush1.msra.mxu0 0.0
  %1125 = vmatprep.subr.mxu0 0.0
  %1126 = vmatpush1.msra.mxu0 0.0
  %1127 = vmatprep.subr.mxu0 0.0
  %1128 = vmatpush1.msra.mxu0 0.0
  %1129 = vmatprep.subr.mxu0 0.0
  %1130 = vmatpush1.msra.mxu0 0.0
  %1131 = vmatprep.mubr.f32.mxu0 0.0
  %1132 = vmatmul.mubr.f32.gmra.mrb[0].mxu0 %v1065
  %v1133 = vpop.f32.mrb[0].mxu0
  %v1134 = vadd.f32 0.0, %v1133
  %v1135 = vpop.f32.mrb[0].mxu0
  %1136 = vdwg.mxu0
  %v1137 = vadd.f32 %v1063, %v1134
  %v1138 = vadd.f32 %v1137, %v672
  %v1139 = vmax.f32 %v1138, 0.0
  %v1141 = vsel %vm383, %v1139, 0
  %1143 = vmatprep.subr.mxu0 0.0
  %1144 = vmatpush1.msra.mxu0 %v86
  %1145 = vmatprep.subr.mxu0 0.0
  %1146 = vmatpush1.msra.mxu0 %v87
  %1147 = vmatprep.subr.mxu0 0.0
  %1148 = vmatpush1.msra.mxu0 0.0
  %1149 = vmatprep.subr.mxu0 0.0
  %1150 = vmatpush1.msra.mxu0 0.0
  %1151 = vmatprep.subr.mxu0 0.0
  %1152 = vmatpush1.msra.mxu0 0.0
  %1153 = vmatprep.subr.mxu0 0.0
  %1154 = vmatpush1.msra.mxu0 0.0
  %1155 = vmatprep.subr.mxu0 0.0
  %1156 = vmatpush1.msra.mxu0 0.0
  %1157 = vmatprep.subr.mxu0 0.0
  %1158 = vmatpush1.msra.mxu0 0.0
  %1159 = vmatprep.subr.mxu0 0.0
  %1160 = vmatpush1.msra.mxu0 0.0
  %1161 = vmatprep.subr.mxu0 0.0
  %1162 = vmatpush1.msra.mxu0 0.0
  %1163 = vmatprep.subr.mxu0 0.0
  %1164 = vmatpush1.msra.mxu0 0.0
  %1165 = vmatprep.subr.mxu0 0.0
  %1166 = vmatpush1.msra.mxu0 0.0
  %1167 = vmatprep.subr.mxu0 0.0
  %1168 = vmatpush1.msra.mxu0 0.0
  %1169 = vmatprep.subr.mxu0 0.0
  %1170 = vmatpush1.msra.mxu0 0.0
  %1171 = vmatprep.subr.mxu0 0.0
  %1172 = vmatpush1.msra.mxu0 0.0
  %1173 = vmatprep.subr.mxu0 0.0
  %1174 = vmatpush1.msra.mxu0 0.0
  %1175 = vmatprep.subr.mxu0 0.0
  %1176 = vmatpush1.msra.mxu0 0.0
  %1177 = vmatprep.subr.mxu0 0.0
  %1178 = vmatpush1.msra.mxu0 0.0
  %1179 = vmatprep.subr.mxu0 0.0
  %1180 = vmatpush1.msra.mxu0 0.0
  %1181 = vmatprep.subr.mxu0 0.0
  %1182 = vmatpush1.msra.mxu0 0.0
  %1183 = vmatprep.subr.mxu0 0.0
  %1184 = vmatpush1.msra.mxu0 0.0
  %1185 = vmatprep.subr.mxu0 0.0
  %1186 = vmatpush1.msra.mxu0 0.0
  %1187 = vmatprep.subr.mxu0 0.0
  %1188 = vmatpush1.msra.mxu0 0.0
  %1189 = vmatprep.subr.mxu0 0.0
  %1190 = vmatpush1.msra.mxu0 0.0
  %1191 = vmatprep.subr.mxu0 0.0
  %1192 = vmatpush1.msra.mxu0 0.0
  %1193 = vmatprep.subr.mxu0 0.0
  %1194 = vmatpush1.msra.mxu0 0.0
  %1195 = vmatprep.subr.mxu0 0.0
  %1196 = vmatpush1.msra.mxu0 0.0
  %1197 = vmatprep.subr.mxu0 0.0
  %1198 = vmatpush1.msra.mxu0 0.0
  %1199 = vmatprep.subr.mxu0 0.0
  %1200 = vmatpush1.msra.mxu0 0.0
  %1201 = vmatprep.subr.mxu0 0.0
  %1202 = vmatpush1.msra.mxu0 0.0
  %1203 = vmatprep.subr.mxu0 0.0
  %1204 = vmatpush1.msra.mxu0 0.0
  %1205 = vmatprep.subr.mxu0 0.0
  %1206 = vmatpush1.msra.mxu0 0.0
  %1207 = vmatprep.mubr.f32.mxu0 0.0
  %1208 = vmatmul.mubr.f32.gmra.mrb[0].mxu0 %v1141
  %v1209 = vpop.f32.mrb[0].mxu0
  %v1210 = vadd.f32 %v680, %v1209
  %v1211 = vpop.f32.mrb[0].mxu0
  %1212 = vdwg.mxu0
  %v1213 = vxor.u32 %v1210, 2147483648
  %v1214 = vmul.f32 %v1213, 1.442695
  %v1215 = vpow.pop %v1214
  %v1216 = vadd.f32 %v1215, 1.0
  %v1217 = vrcp.pop %v1216
  %v1218 = vmul.f32 1.0, %v1217
  %1220 = vset.pattern.permute.xlu0 0
  %1221 = vperm.xlu0 %1220, %v1218
  %v1222 = vpop.permute.xlu0 %1221
  %v1224 = vsel %vm761, %v49, %v1222
  %1226 = vset.pattern.permute.xlu0 0
  %1227 = vperm.xlu0 %1226, %v1224
  %v1228 = vpop.permute.xlu0 %1227
  %v1230 = vmul.f32 %v1228, %v203
  %1231 = vset.pattern.permute.xlu0 1
  %1232 = vperm.xlu0 %1231, %v1224
  %v1233 = vpop.permute.xlu0 %1232
  %v1235 = vmul.f32 %v1233, %v212
  %v1236 = vadd.f32 %v1230, %v1235
  %1237 = vset.pattern.permute.xlu0 2
  %1238 = vperm.xlu0 %1237, %v1224
  %v1239 = vpop.permute.xlu0 %1238
  %v1241 = vmul.f32 %v1239, %v222
  %v1242 = vadd.f32 %v1236, %v1241
  %1243 = vmatprep.subr.mxu0 0.0
  %1244 = vmatpush1.msra.mxu0 %v1242
  %1245 = vmatprep.subr.mxu0 0.0
  %1246 = vmatpush1.msra.mxu0 0.0
  %1247 = vmatprep.subr.mxu0 0.0
  %1248 = vmatpush1.msra.mxu0 0.0
  %1249 = vmatprep.subr.mxu0 0.0
  %1250 = vmatpush1.msra.mxu0 0.0
  %1251 = vmatprep.subr.mxu0 0.0
  %1252 = vmatpush1.msra.mxu0 0.0
  %1253 = vmatprep.subr.mxu0 0.0
  %1254 = vmatpush1.msra.mxu0 0.0
  %1255 = vmatprep.subr.mxu0 0.0
  %1256 = vmatpush1.msra.mxu0 0.0
  %1257 = vmatprep.subr.mxu0 0.0
  %1258 = vmatpush1.msra.mxu0 0.0
  %1259 = vmatprep.subr.mxu0 0.0
  %1260 = vmatpush1.msra.mxu0 0.0
  %1261 = vmatprep.subr.mxu0 0.0
  %1262 = vmatpush1.msra.mxu0 0.0
  %1263 = vmatprep.subr.mxu0 0.0
  %1264 = vmatpush1.msra.mxu0 0.0
  %1265 = vmatprep.subr.mxu0 0.0
  %1266 = vmatpush1.msra.mxu0 0.0
  %1267 = vmatprep.subr.mxu0 0.0
  %1268 = vmatpush1.msra.mxu0 0.0
  %1269 = vmatprep.subr.mxu0 0.0
  %1270 = vmatpush1.msra.mxu0 0.0
  %1271 = vmatprep.subr.mxu0 0.0
  %1272 = vmatpush1.msra.mxu0 0.0
  %1273 = vmatprep.subr.mxu0 0.0
  %1274 = vmatpush1.msra.mxu0 0.0
  %1275 = vmatprep.subr.mxu0 0.0
  %1276 = vmatpush1.msra.mxu0 0.0
  %1277 = vmatprep.subr.mxu0 0.0
  %1278 = vmatpush1.msra.mxu0 0.0
  %1279 = vmatprep.subr.mxu0 0.0
  %1280 = vmatpush1.msra.mxu0 0.0
  %1281 = vmatprep.subr.mxu0 0.0
  %1282 = vmatpush1.msra.mxu0 0.0
  %1283 = vmatprep.subr.mxu0 0.0
  %1284 = vmatpush1.msra.mxu0 0.0
  %1285 = vmatprep.subr.mxu0 0.0
  %1286 = vmatpush1.msra.mxu0 0.0
  %1287 = vmatprep.subr.mxu0 0.0
  %1288 = vmatpush1.msra.mxu0 0.0
  %1289 = vmatprep.subr.mxu0 0.0
  %1290 = vmatpush1.msra.mxu0 0.0
  %1291 = vmatprep.subr.mxu0 0.0
  %1292 = vmatpush1.msra.mxu0 0.0
  %1293 = vmatprep.subr.mxu0 0.0
  %1294 = vmatpush1.msra.mxu0 0.0
  %1295 = vmatprep.subr.mxu0 0.0
  %1296 = vmatpush1.msra.mxu0 0.0
  %1297 = vmatprep.subr.mxu0 0.0
  %1298 = vmatpush1.msra.mxu0 0.0
  %1299 = vmatprep.subr.mxu0 0.0
  %1300 = vmatpush1.msra.mxu0 0.0
  %1301 = vmatprep.subr.mxu0 0.0
  %1302 = vmatpush1.msra.mxu0 0.0
  %1303 = vmatprep.subr.mxu0 0.0
  %1304 = vmatpush1.msra.mxu0 0.0
  %1305 = vmatprep.subr.mxu0 0.0
  %1306 = vmatpush1.msra.mxu0 0.0
  %1307 = vmatprep.mubr.f32.mxu0 0.0
  %1308 = vmatmul.mubr.f32.gmra.mrb[0].mxu0 %v227
  %v1309 = vpop.f32.mrb[0].mxu0
  %v1310 = vadd.f32 %v185, %v1309
  %v1311 = vpop.f32.mrb[0].mxu0
  %1312 = vmatprep.mubr.f32.mxu0 0.0
  %1313 = vmatmul.mubr.f32.gmra.mrb[0].mxu0 %v230
  %v1314 = vpop.f32.mrb[0].mxu0
  %v1315 = vadd.f32 %v186, %v1314
  %v1316 = vpop.f32.mrb[0].mxu0
  %1317 = vmatprep.mubr.f32.mxu0 0.0
  %1318 = vmatmul.mubr.f32.gmra.mrb[0].mxu0 %v233
  %v1319 = vpop.f32.mrb[0].mxu0
  %v1320 = vadd.f32 %v187, %v1319
  %v1321 = vpop.f32.mrb[0].mxu0
  %1322 = vmatprep.mubr.f32.mxu0 0.0
  %1323 = vmatmul.mubr.f32.gmra.mrb[0].mxu0 %v236
  %v1324 = vpop.f32.mrb[0].mxu0
  %v1325 = vadd.f32 %v188, %v1324
  %v1326 = vpop.f32.mrb[0].mxu0
  %1327 = vmatprep.mubr.f32.mxu0 0.0
  %1328 = vmatmul.mubr.f32.gmra.mrb[0].mxu0 %v239
  %v1329 = vpop.f32.mrb[0].mxu0
  %v1330 = vadd.f32 %v189, %v1329
  %v1331 = vpop.f32.mrb[0].mxu0
  %1332 = vmatprep.mubr.f32.mxu0 0.0
  %1333 = vmatmul.mubr.f32.gmra.mrb[0].mxu0 %v242
  %v1334 = vpop.f32.mrb[0].mxu0
  %v1335 = vadd.f32 %v190, %v1334
  %v1336 = vpop.f32.mrb[0].mxu0
  %1337 = vmatprep.mubr.f32.mxu0 0.0
  %1338 = vmatmul.mubr.f32.gmra.mrb[0].mxu0 %v245
  %v1339 = vpop.f32.mrb[0].mxu0
  %v1340 = vadd.f32 %v191, %v1339
  %v1341 = vpop.f32.mrb[0].mxu0
  %1342 = vmatprep.mubr.f32.mxu0 0.0
  %1343 = vmatmul.mubr.f32.gmra.mrb[0].mxu0 %v248
  %v1344 = vpop.f32.mrb[0].mxu0
  %v1345 = vadd.f32 %v192, %v1344
  %v1346 = vpop.f32.mrb[0].mxu0
  %1347 = vdwg.mxu0
  %v1348 = vadd.f32 %v1310, %v359
  %v1349 = vadd.f32 %v1315, %v359
  %v1350 = vadd.f32 %v1320, %v359
  %v1351 = vadd.f32 %v1325, %v359
  %v1352 = vadd.f32 %v1330, %v359
  %v1353 = vadd.f32 %v1335, %v359
  %v1354 = vadd.f32 %v1340, %v359
  %v1355 = vadd.f32 %v1345, %v359
  %v1356 = vmax.f32 %v1348, 0.0
  %v1357 = vmax.f32 %v1349, 0.0
  %v1358 = vmax.f32 %v1350, 0.0
  %v1359 = vmax.f32 %v1351, 0.0
  %v1360 = vmax.f32 %v1352, 0.0
  %v1361 = vmax.f32 %v1353, 0.0
  %v1362 = vmax.f32 %v1354, 0.0
  %v1363 = vmax.f32 %v1355, 0.0
  %v1365 = vsel %vm383, %v1356, 0
  %v1368 = vsel %vm383, %v1357, 0
  %v1371 = vsel %vm383, %v1358, 0
  %v1374 = vsel %vm383, %v1359, 0
  %v1377 = vsel %vm383, %v1360, 0
  %v1380 = vsel %vm383, %v1361, 0
  %v1383 = vsel %vm383, %v1362, 0
  %v1386 = vsel %vm383, %v1363, 0
  %1388 = vmatprep.subr.mxu0 0.0
  %1389 = vmatpush1.msra.mxu0 %v77
  %1390 = vmatprep.subr.mxu0 0.0
  %1391 = vmatpush1.msra.mxu0 %v78
  %1392 = vmatprep.subr.mxu0 0.0
  %1393 = vmatpush1.msra.mxu0 0.0
  %1394 = vmatprep.subr.mxu0 0.0
  %1395 = vmatpush1.msra.mxu0 0.0
  %1396 = vmatprep.subr.mxu0 0.0
  %1397 = vmatpush1.msra.mxu0 0.0
  %1398 = vmatprep.subr.mxu0 0.0
  %1399 = vmatpush1.msra.mxu0 0.0
  %1400 = vmatprep.subr.mxu0 0.0
  %1401 = vmatpush1.msra.mxu0 0.0
  %1402 = vmatprep.subr.mxu0 0.0
  %1403 = vmatpush1.msra.mxu0 0.0
  %1404 = vmatprep.subr.mxu0 0.0
  %1405 = vmatpush1.msra.mxu0 0.0
  %1406 = vmatprep.subr.mxu0 0.0
  %1407 = vmatpush1.msra.mxu0 0.0
  %1408 = vmatprep.subr.mxu0 0.0
  %1409 = vmatpush1.msra.mxu0 0.0
  %1410 = vmatprep.subr.mxu0 0.0
  %1411 = vmatpush1.msra.mxu0 0.0
  %1412 = vmatprep.subr.mxu0 0.0
  %1413 = vmatpush1.msra.mxu0 0.0
  %1414 = vmatprep.subr.mxu0 0.0
  %1415 = vmatpush1.msra.mxu0 0.0
  %1416 = vmatprep.subr.mxu0 0.0
  %1417 = vmatpush1.msra.mxu0 0.0
  %1418 = vmatprep.subr.mxu0 0.0
  %1419 = vmatpush1.msra.mxu0 0.0
  %1420 = vmatprep.subr.mxu0 0.0
  %1421 = vmatpush1.msra.mxu0 0.0
  %1422 = vmatprep.subr.mxu0 0.0
  %1423 = vmatpush1.msra.mxu0 0.0
  %1424 = vmatprep.subr.mxu0 0.0
  %1425 = vmatpush1.msra.mxu0 0.0
  %1426 = vmatprep.subr.mxu0 0.0
  %1427 = vmatpush1.msra.mxu0 0.0
  %1428 = vmatprep.subr.mxu0 0.0
  %1429 = vmatpush1.msra.mxu0 0.0
  %1430 = vmatprep.subr.mxu0 0.0
  %1431 = vmatpush1.msra.mxu0 0.0
  %1432 = vmatprep.subr.mxu0 0.0
  %1433 = vmatpush1.msra.mxu0 0.0
  %1434 = vmatprep.subr.mxu0 0.0
  %1435 = vmatpush1.msra.mxu0 0.0
  %1436 = vmatprep.subr.mxu0 0.0
  %1437 = vmatpush1.msra.mxu0 0.0
  %1438 = vmatprep.subr.mxu0 0.0
  %1439 = vmatpush1.msra.mxu0 0.0
  %1440 = vmatprep.subr.mxu0 0.0
  %1441 = vmatpush1.msra.mxu0 0.0
  %1442 = vmatprep.subr.mxu0 0.0
  %1443 = vmatpush1.msra.mxu0 0.0
  %1444 = vmatprep.subr.mxu0 0.0
  %1445 = vmatpush1.msra.mxu0 0.0
  %1446 = vmatprep.subr.mxu0 0.0
  %1447 = vmatpush1.msra.mxu0 0.0
  %1448 = vmatprep.subr.mxu0 0.0
  %1449 = vmatpush1.msra.mxu0 0.0
  %1450 = vmatprep.subr.mxu0 0.0
  %1451 = vmatpush1.msra.mxu0 0.0
  %1452 = vmatprep.mubr.f32.mxu0 0.0
  %1453 = vmatmul.mubr.f32.gmra.mrb[0].mxu0 %v1365
  %v1454 = vpop.f32.mrb[0].mxu0
  %v1455 = vadd.f32 %v381, %v1454
  %v1456 = vpop.f32.mrb[0].mxu0
  %1457 = vmatprep.mubr.f32.mxu0 0.0
  %1458 = vmatmul.mubr.f32.gmra.mrb[0].mxu0 %v1368
  %v1459 = vpop.f32.mrb[0].mxu0
  %v1460 = vadd.f32 %v381, %v1459
  %v1461 = vpop.f32.mrb[0].mxu0
  %1462 = vmatprep.mubr.f32.mxu0 0.0
  %1463 = vmatmul.mubr.f32.gmra.mrb[0].mxu0 %v1371
  %v1464 = vpop.f32.mrb[0].mxu0
  %v1465 = vadd.f32 %v381, %v1464
  %v1466 = vpop.f32.mrb[0].mxu0
  %1467 = vmatprep.mubr.f32.mxu0 0.0
  %1468 = vmatmul.mubr.f32.gmra.mrb[0].mxu0 %v1374
  %v1469 = vpop.f32.mrb[0].mxu0
  %v1470 = vadd.f32 %v381, %v1469
  %v1471 = vpop.f32.mrb[0].mxu0
  %1472 = vmatprep.mubr.f32.mxu0 0.0
  %1473 = vmatmul.mubr.f32.gmra.mrb[0].mxu0 %v1377
  %v1474 = vpop.f32.mrb[0].mxu0
  %v1475 = vadd.f32 %v381, %v1474
  %v1476 = vpop.f32.mrb[0].mxu0
  %1477 = vmatprep.mubr.f32.mxu0 0.0
  %1478 = vmatmul.mubr.f32.gmra.mrb[0].mxu0 %v1380
  %v1479 = vpop.f32.mrb[0].mxu0
  %v1480 = vadd.f32 %v381, %v1479
  %v1481 = vpop.f32.mrb[0].mxu0
  %1482 = vmatprep.mubr.f32.mxu0 0.0
  %1483 = vmatmul.mubr.f32.gmra.mrb[0].mxu0 %v1383
  %v1484 = vpop.f32.mrb[0].mxu0
  %v1485 = vadd.f32 %v381, %v1484
  %v1486 = vpop.f32.mrb[0].mxu0
  %1487 = vmatprep.mubr.f32.mxu0 0.0
  %1488 = vmatmul.mubr.f32.gmra.mrb[0].mxu0 %v1386
  %v1489 = vpop.f32.mrb[0].mxu0
  %v1490 = vadd.f32 %v381, %v1489
  %v1491 = vpop.f32.mrb[0].mxu0
  %1492 = vdwg.mxu0
  %v1493 = vmax.f32 %v1455, 0.0
  %v1494 = vmax.f32 %v1460, 0.0
  %v1495 = vmax.f32 %v1465, 0.0
  %v1496 = vmax.f32 %v1470, 0.0
  %v1497 = vmax.f32 %v1475, 0.0
  %v1498 = vmax.f32 %v1480, 0.0
  %v1499 = vmax.f32 %v1485, 0.0
  %v1500 = vmax.f32 %v1490, 0.0
  %v1501 = vmul.f32 %v1493, %v524
  %v1502 = vmul.f32 %v1494, %v529
  %v1503 = vmul.f32 %v1495, %v534
  %v1504 = vmul.f32 %v1496, %v539
  %v1505 = vmul.f32 %v1497, %v544
  %v1506 = vmul.f32 %v1498, %v549
  %v1507 = vmul.f32 %v1499, %v554
  %v1508 = vmul.f32 %v1500, %v559
  %v1509 = vmax.f32 %v1501, %v1502
  %v1510 = vmax.f32 %v1509, %v1503
  %v1511 = vmax.f32 %v1510, %v1504
  %v1512 = vmax.f32 %v1511, %v1505
  %v1513 = vmax.f32 %v1512, %v1506
  %v1514 = vmax.f32 %v1513, %v1507
  %v1515 = vmax.f32 %v1514, %v1508
  %v1516 = vmul.f32 %v1228, %v579
  %v1517 = vmul.f32 %v1233, %v584
  %v1518 = vadd.f32 %v1516, %v1517
  %v1519 = vmul.f32 %v1239, %v590
  %v1520 = vadd.f32 %v1518, %v1519
  %v1522 = vsel %vm593, %v1515, 0
  %1524 = vmatprep.subr.mxu0 0.0
  %1525 = vmatpush1.msra.mxu0 %v81
  %1526 = vmatprep.subr.mxu0 0.0
  %1527 = vmatpush1.msra.mxu0 %v82
  %1528 = vmatprep.subr.mxu0 0.0
  %1529 = vmatpush1.msra.mxu0 %v83
  %1530 = vmatprep.subr.mxu0 0.0
  %1531 = vmatpush1.msra.mxu0 %v84
  %1532 = vmatprep.subr.mxu0 0.0
  %1533 = vmatpush1.msra.mxu0 0.0
  %1534 = vmatprep.subr.mxu0 0.0
  %1535 = vmatpush1.msra.mxu0 0.0
  %1536 = vmatprep.subr.mxu0 0.0
  %1537 = vmatpush1.msra.mxu0 0.0
  %1538 = vmatprep.subr.mxu0 0.0
  %1539 = vmatpush1.msra.mxu0 0.0
  %1540 = vmatprep.subr.mxu0 0.0
  %1541 = vmatpush1.msra.mxu0 0.0
  %1542 = vmatprep.subr.mxu0 0.0
  %1543 = vmatpush1.msra.mxu0 0.0
  %1544 = vmatprep.subr.mxu0 0.0
  %1545 = vmatpush1.msra.mxu0 0.0
  %1546 = vmatprep.subr.mxu0 0.0
  %1547 = vmatpush1.msra.mxu0 0.0
  %1548 = vmatprep.subr.mxu0 0.0
  %1549 = vmatpush1.msra.mxu0 0.0
  %1550 = vmatprep.subr.mxu0 0.0
  %1551 = vmatpush1.msra.mxu0 0.0
  %1552 = vmatprep.subr.mxu0 0.0
  %1553 = vmatpush1.msra.mxu0 0.0
  %1554 = vmatprep.subr.mxu0 0.0
  %1555 = vmatpush1.msra.mxu0 0.0
  %1556 = vmatprep.subr.mxu0 0.0
  %1557 = vmatpush1.msra.mxu0 0.0
  %1558 = vmatprep.subr.mxu0 0.0
  %1559 = vmatpush1.msra.mxu0 0.0
  %1560 = vmatprep.subr.mxu0 0.0
  %1561 = vmatpush1.msra.mxu0 0.0
  %1562 = vmatprep.subr.mxu0 0.0
  %1563 = vmatpush1.msra.mxu0 0.0
  %1564 = vmatprep.subr.mxu0 0.0
  %1565 = vmatpush1.msra.mxu0 0.0
  %1566 = vmatprep.subr.mxu0 0.0
  %1567 = vmatpush1.msra.mxu0 0.0
  %1568 = vmatprep.subr.mxu0 0.0
  %1569 = vmatpush1.msra.mxu0 0.0
  %1570 = vmatprep.subr.mxu0 0.0
  %1571 = vmatpush1.msra.mxu0 0.0
  %1572 = vmatprep.subr.mxu0 0.0
  %1573 = vmatpush1.msra.mxu0 0.0
  %1574 = vmatprep.subr.mxu0 0.0
  %1575 = vmatpush1.msra.mxu0 0.0
  %1576 = vmatprep.subr.mxu0 0.0
  %1577 = vmatpush1.msra.mxu0 0.0
  %1578 = vmatprep.subr.mxu0 0.0
  %1579 = vmatpush1.msra.mxu0 0.0
  %1580 = vmatprep.subr.mxu0 0.0
  %1581 = vmatpush1.msra.mxu0 0.0
  %1582 = vmatprep.subr.mxu0 0.0
  %1583 = vmatpush1.msra.mxu0 0.0
  %1584 = vmatprep.subr.mxu0 0.0
  %1585 = vmatpush1.msra.mxu0 0.0
  %1586 = vmatprep.subr.mxu0 0.0
  %1587 = vmatpush1.msra.mxu0 0.0
  %1588 = vmatprep.mubr.f32.mxu0 0.0
  %1589 = vmatmul.mubr.f32.gmra.mrb[0].mxu0 %v1522
  %v1590 = vpop.f32.mrb[0].mxu0
  %v1591 = vadd.f32 0.0, %v1590
  %v1592 = vpop.f32.mrb[0].mxu0
  %1593 = vdwg.mxu0
  %v1594 = vadd.f32 %v1520, %v1591
  %v1595 = vadd.f32 %v1594, %v672
  %v1596 = vmax.f32 %v1595, 0.0
  %v1598 = vsel %vm383, %v1596, 0
  %1600 = vmatprep.subr.mxu0 0.0
  %1601 = vmatpush1.msra.mxu0 %v86
  %1602 = vmatprep.subr.mxu0 0.0
  %1603 = vmatpush1.msra.mxu0 %v87
  %1604 = vmatprep.subr.mxu0 0.0
  %1605 = vmatpush1.msra.mxu0 0.0
  %1606 = vmatprep.subr.mxu0 0.0
  %1607 = vmatpush1.msra.mxu0 0.0
  %1608 = vmatprep.subr.mxu0 0.0
  %1609 = vmatpush1.msra.mxu0 0.0
  %1610 = vmatprep.subr.mxu0 0.0
  %1611 = vmatpush1.msra.mxu0 0.0
  %1612 = vmatprep.subr.mxu0 0.0
  %1613 = vmatpush1.msra.mxu0 0.0
  %1614 = vmatprep.subr.mxu0 0.0
  %1615 = vmatpush1.msra.mxu0 0.0
  %1616 = vmatprep.subr.mxu0 0.0
  %1617 = vmatpush1.msra.mxu0 0.0
  %1618 = vmatprep.subr.mxu0 0.0
  %1619 = vmatpush1.msra.mxu0 0.0
  %1620 = vmatprep.subr.mxu0 0.0
  %1621 = vmatpush1.msra.mxu0 0.0
  %1622 = vmatprep.subr.mxu0 0.0
  %1623 = vmatpush1.msra.mxu0 0.0
  %1624 = vmatprep.subr.mxu0 0.0
  %1625 = vmatpush1.msra.mxu0 0.0
  %1626 = vmatprep.subr.mxu0 0.0
  %1627 = vmatpush1.msra.mxu0 0.0
  %1628 = vmatprep.subr.mxu0 0.0
  %1629 = vmatpush1.msra.mxu0 0.0
  %1630 = vmatprep.subr.mxu0 0.0
  %1631 = vmatpush1.msra.mxu0 0.0
  %1632 = vmatprep.subr.mxu0 0.0
  %1633 = vmatpush1.msra.mxu0 0.0
  %1634 = vmatprep.subr.mxu0 0.0
  %1635 = vmatpush1.msra.mxu0 0.0
  %1636 = vmatprep.subr.mxu0 0.0
  %1637 = vmatpush1.msra.mxu0 0.0
  %1638 = vmatprep.subr.mxu0 0.0
  %1639 = vmatpush1.msra.mxu0 0.0
  %1640 = vmatprep.subr.mxu0 0.0
  %1641 = vmatpush1.msra.mxu0 0.0
  %1642 = vmatprep.subr.mxu0 0.0
  %1643 = vmatpush1.msra.mxu0 0.0
  %1644 = vmatprep.subr.mxu0 0.0
  %1645 = vmatpush1.msra.mxu0 0.0
  %1646 = vmatprep.subr.mxu0 0.0
  %1647 = vmatpush1.msra.mxu0 0.0
  %1648 = vmatprep.subr.mxu0 0.0
  %1649 = vmatpush1.msra.mxu0 0.0
  %1650 = vmatprep.subr.mxu0 0.0
  %1651 = vmatpush1.msra.mxu0 0.0
  %1652 = vmatprep.subr.mxu0 0.0
  %1653 = vmatpush1.msra.mxu0 0.0
  %1654 = vmatprep.subr.mxu0 0.0
  %1655 = vmatpush1.msra.mxu0 0.0
  %1656 = vmatprep.subr.mxu0 0.0
  %1657 = vmatpush1.msra.mxu0 0.0
  %1658 = vmatprep.subr.mxu0 0.0
  %1659 = vmatpush1.msra.mxu0 0.0
  %1660 = vmatprep.subr.mxu0 0.0
  %1661 = vmatpush1.msra.mxu0 0.0
  %1662 = vmatprep.subr.mxu0 0.0
  %1663 = vmatpush1.msra.mxu0 0.0
  %1664 = vmatprep.mubr.f32.mxu0 0.0
  %1665 = vmatmul.mubr.f32.gmra.mrb[0].mxu0 %v1598
  %v1666 = vpop.f32.mrb[0].mxu0
  %v1667 = vadd.f32 %v680, %v1666
  %v1668 = vpop.f32.mrb[0].mxu0
  %1669 = vdwg.mxu0
  %v1670 = vxor.u32 %v1667, 2147483648
  %v1671 = vmul.f32 %v1670, 1.442695
  %v1672 = vpow.pop %v1671
  %v1673 = vadd.f32 %v1672, 1.0
  %v1674 = vrcp.pop %v1673
  %v1675 = vmul.f32 1.0, %v1674
  %1677 = vset.pattern.permute.xlu0 0
  %1678 = vperm.xlu0 %1677, %v1675
  %v1679 = vpop.permute.xlu0 %1678
  %v1681 = vsel %vm761, %v49, %v1679
  %vm1682 = vcmask 23552
  %1683 = vst.msk [vmem:[%s14] sm:$0xff] %vm1682, %v1681
  // Predicated region
  $region58: #{forward.1} parent=0 // pred_check
    _
  $region59: #{forward.1} parent=0 // pred_check_branch
    %1685 = sbr.rel (0) target = $region61
  $region60: #{forward.1} parent=0 // pred_region
    _
  $region61: #{forward.1} parent=0 // pred_fallthru
    _
  // Predicated region
  $region62: #{forward.1} parent=0 // pred_check
    _
  $region63: #{forward.1} parent=0 // pred_check_branch
    %1687 = sbr.rel (0) target = $region65
  $region64: #{forward.1} parent=0 // pred_region
    _
  $region65: #{forward.1} parent=0 // pred_fallthru
    _

</llo_original>
